<compile_context>
chip_gen: v6e
topology: v6e:2x2x1
jax: 0.10.0
libtpu: 0.0.40
codegen_flags: <defaults>
</compile_context>

<pallas_src>
import functools

import jax
import jax.numpy as jnp
from jax.experimental import pallas as pl
from jax.experimental.pallas import tpu as pltpu

KSIZE = 7
PAD = (KSIZE - 1) // 2


def _round_up(x, m):
    return (x + m - 1) // m * m


# One-time probe of pltpu.roll: (supported, follows np.roll sign convention).
_ROLL_PROBE = None


def _probe_roll():
    global _ROLL_PROBE
    if _ROLL_PROBE is None:
        try:
            def k(x_ref, o_ref):
                o_ref[...] = pltpu.roll(x_ref[...], 1, 1)

            x = jnp.broadcast_to(jnp.arange(128, dtype=jnp.float32), (8, 128))
            out = pl.pallas_call(
                k, out_shape=jax.ShapeDtypeStruct((8, 128), jnp.float32))(x)
            # np.roll(x, 1, axis=1): out[:, 0] == x[:, -1] == 127
            _ROLL_PROBE = (True, bool(out[0, 0] == 127.0))
        except Exception:
            _ROLL_PROBE = (False, True)
    return _ROLL_PROBE


def spatial_gate_kernel(w_ref, b_ref, x_ref, o_ref, pad_ref, *,
                        C, H, W, NB, halo, use_roll, roll_np):
    # w_ref  : SMEM (2*7*7,)   conv weights with BN scale folded in
    # b_ref  : SMEM (1,)       folded BN shift
    # x_ref  : VMEM (NB, C, HW)
    # o_ref  : VMEM (NB, C, HW)
    # pad_ref: VMEM (2, NB, HW + 2*halo)  zero-halo'd flattened pooled maps
    HW = H * W
    Lpad = HW + 2 * halo
    f32 = jnp.float32

    CR = 8 if C >= 8 else C          # sublane-dense channel chunk
    nfull = C // CR
    c_tail = nfull * CR
    unroll = min(nfull, 8)

    # ---------------- ChannelPool: per-sample max & mean over C --------------
    for b in range(NB):
        xb = x_ref.at[b]

        def pool_body(i, carry, xb=xb):
            mx, sm = carry
            c0 = pl.multiple_of(i * CR, CR)
            blk = xb[pl.ds(c0, CR), :].astype(f32)            # (CR, HW) dense
            return jnp.maximum(mx, blk), sm + blk             # pure VPU

        mx, sm = jax.lax.fori_loop(
            0, nfull, pool_body,
            (jnp.full((CR, HW), -jnp.inf, f32), jnp.zeros((CR, HW), f32)),
            unroll=unroll)
        cmax = jnp.max(mx, axis=0, keepdims=True)             # single XLU reduce
        csum = jnp.sum(sm, axis=0, keepdims=True)
        if c_tail < C:                                        # static channel tail
            tail = xb[c_tail:C, :].astype(f32)                # (C-c_tail, HW)
            cmax = jnp.maximum(cmax, jnp.max(tail, axis=0, keepdims=True))
            csum = csum + jnp.sum(tail, axis=0, keepdims=True)
        pad_ref[0, b:b + 1, halo:halo + HW] = cmax
        pad_ref[1, b:b + 1, halo:halo + HW] = csum * (1.0 / C)

    # Zero only the halo lanes; interior fully overwritten above.  Re-done every
    # grid step so the kernel stays megacore-safe under "parallel" sharding.
    pad_ref[:, :, 0:halo] = jnp.zeros((2, NB, halo), f32)
    pad_ref[:, :, halo + HW:Lpad] = jnp.zeros((2, NB, halo), f32)

    # ------------- 7x7 conv (2 ch -> 1 ch), NB samples batched on sublanes ---
    # out[n, i] = sum_{c,dy,dx} w[c,dy,dx] * pad[c, n, halo + i + dy*W + dx]
    parts = [jnp.zeros((NB, HW), f32) for _ in range(KSIZE)]  # per-dx chains
    for c in range(2):
        for dy in range(-PAD, PAD + 1):
            base = halo + dy * W
            win = pad_ref[c, :, base:base + HW] if use_roll else None  # (NB, HW)
            for j, dx in enumerate(range(-PAD, PAD + 1)):
                wgt = w_ref[c * KSIZE * KSIZE + (dy + PAD) * KSIZE + (dx + PAD)]
                if use_roll:
                    if dx == 0:
                        tap = win
                    else:
                        shift = (-dx) % HW if roll_np else dx % HW
                        tap = pltpu.roll(win, shift, 1)       # XLU lane rotate
                else:
                    off = base + dx
                    tap = pad_ref[c, :, off:off + HW]
                parts[j] = parts[j] + tap * wgt

    # Left/right image borders (and any roll wraparound) masked per dx.
    col = jax.lax.broadcasted_iota(jnp.int32, (NB, HW), 1) % W
    acc = jnp.full((NB, HW), b_ref[0], f32)                   # folded BN shift
    for j, dx in enumerate(range(-PAD, PAD + 1)):
        valid = jnp.logical_and(col + dx >= 0, col + dx < W)
        acc = acc + jnp.where(valid, parts[j], 0.0)
    scale = jax.nn.sigmoid(acc)                               # (NB, HW) f32

    # ---------------- gate: o = x * scale, streamed per channel chunk --------
    for b in range(NB):
        xb = x_ref.at[b]
        ob = o_ref.at[b]
        # Hoisted sublane broadcast + cast (fori body traced once -> emitted once).
        scale_row = scale[b:b + 1, :].astype(o_ref.dtype)     # (1, HW)
        scale_blk = jnp.broadcast_to(scale_row, (CR, HW))

        def gate_body(i, _, xb=xb, ob=ob, scale_blk=scale_blk):
            c0 = pl.multiple_of(i * CR, CR)
            blk = xb[pl.ds(c0, CR), :]                        # native dtype math
            ob[pl.ds(c0, CR), :] = (blk * scale_blk).astype(o_ref.dtype)
            return 0

        jax.lax.fori_loop(0, nfull, gate_body, 0, unroll=unroll)
        if c_tail < C:
            blk = xb[c_tail:C, :]
            ob[c_tail:C, :] = (blk * scale_row).astype(o_ref.dtype)


def spatial_gate(x, conv_w, bn_gamma, bn_beta, bn_mean, bn_var, eps=1e-5):
    """x: (N, C, H, W). conv_w: (1, 2, 7, 7). BN params: (1,)."""
    N, C, H, W = x.shape
    HW = H * W

    # Fold inference-mode BatchNorm:  bn(conv(p)) = conv(p) * s + b
    s = bn_gamma / jnp.sqrt(bn_var + eps)
    w_folded = (conv_w[0] * s[0]).reshape(-1).astype(jnp.float32)   # (2*7*7,)
    b_folded = (bn_beta - bn_mean * s).astype(jnp.float32)          # (1,)

    x_flat = x.reshape(N, C, HW)   # free: NCHW is contiguous -> (N, C, H*W)

    # Conv halo (>= PAD*W + PAD), rounded to a lane multiple so the pooled-map
    # interior stores are unmasked / lane-aligned.
    halo = max(_round_up(PAD * W + PAD, 128), 128)
    Lpad = HW + 2 * halo
    roll_ok, roll_np = _probe_roll()
    use_roll = (HW % 128 == 0) and roll_ok

    # Batch NB (<=8) samples per grid step, sized by a conservative VMEM budget
    # (2x double-buffered input + 2x output blocks + f32 conv scratch).
    dsize = jnp.dtype(x.dtype).itemsize
    per_sample = 4 * C * HW * dsize + 2 * Lpad * 4
    budget = 24 * 1024 * 1024
    NB = int(max(1, min(8, N, budget // max(per_sample, 1))))
    est = NB * per_sample + (2 << 20)
    vmem_limit = int(min(max(2 * est, 32 * 2 ** 20), 56 * 2 ** 20))
    # TODO(synk): if a single sample (4*C*HW*dsize) still exceeds the budget
    # (large C*HW on v7x's 64 MiB VMEM / v5e's 16 MiB default scoped limit),
    # split into a pool+conv pass (C as an "arbitrary" reduction axis) and a
    # (C_tile, HW_tile) gate pass with a 3-row conv halo between HW tiles.

    kernel = functools.partial(
        spatial_gate_kernel, C=C, H=H, W=W, NB=NB, halo=halo,
        use_roll=use_roll, roll_np=roll_np)

    out_flat = pl.pallas_call(
        kernel,
        out_shape=jax.ShapeDtypeStruct((N, C, HW), x.dtype),
        grid=(pl.cdiv(N, NB),),
        in_specs=[
            pl.BlockSpec(memory_space=pltpu.MemorySpace.SMEM),   # folded weights
            pl.BlockSpec(memory_space=pltpu.MemorySpace.SMEM),   # folded shift
            pl.BlockSpec((NB, C, HW), lambda n: (n, 0, 0)),      # x block
        ],
        out_specs=pl.BlockSpec((NB, C, HW), lambda n: (n, 0, 0)),
        scratch_shapes=[pltpu.VMEM((2, NB, Lpad), jnp.float32)],
        compiler_params=pltpu.CompilerParams(
            # TODO(synk): on v7x verify this batch axis shards across both
            # TensorCores; if not, switch to pltpu.CORE_PARALLEL / core_map.
            dimension_semantics=("parallel",),
            vmem_limit_bytes=vmem_limit),
    )(w_folded, b_folded, x_flat)
    return out_flat.reshape(N, C, H, W)


def _reference(x, conv_w, bn_gamma, bn_beta, bn_mean, bn_var, eps=1e-5):
    pooled = jnp.concatenate(
        [x.max(axis=1, keepdims=True), x.mean(axis=1, keepdims=True)], axis=1)
    conv = jax.lax.conv_general_dilated(
        pooled, conv_w, window_strides=(1, 1),
        padding=[(PAD, PAD), (PAD, PAD)],
        dimension_numbers=("NCHW", "OIHW", "NCHW"))
    g = bn_gamma.reshape(1, -1, 1, 1)
    bta = bn_beta.reshape(1, -1, 1, 1)
    mu = bn_mean.reshape(1, -1, 1, 1)
    var = bn_var.reshape(1, -1, 1, 1)
    bn = (conv - mu) / jnp.sqrt(var + eps) * g + bta
    return x * jax.nn.sigmoid(bn)


if __name__ == "__main__":
    def check(N, C, H, W, key):
        kx, kw = jax.random.split(key)
        x = jax.random.normal(kx, (N, C, H, W), dtype=jnp.float32)
        # Deterministic Conv2d(2, 1, kernel_size=7, bias=False) weight init.
        fan_in = 2 * KSIZE * KSIZE
        bound = 1.0 / (fan_in ** 0.5)
        conv_w = jax.random.uniform(kw, (1, 2, KSIZE, KSIZE),
                                    minval=-bound, maxval=bound,
                                    dtype=jnp.float32)
        # Non-trivial inference-mode BatchNorm2d(1) stats to exercise the fold.
        bn_gamma = jnp.full((1,), 1.25, jnp.float32)
        bn_beta = jnp.full((1,), -0.10, jnp.float32)
        bn_mean = jnp.full((1,), 0.05, jnp.float32)
        bn_var = jnp.full((1,), 0.90, jnp.float32)

        out = jax.block_until_ready(
            spatial_gate(x, conv_w, bn_gamma, bn_beta, bn_mean, bn_var))
        ref = _reference(x, conv_w, bn_gamma, bn_beta, bn_mean, bn_var)
        assert out.shape == x.shape and out.dtype == x.dtype
        err = float(jnp.max(jnp.abs(out - ref)))
        assert jnp.allclose(out, ref, atol=3e-5, rtol=3e-5), (N, C, H, W, err)

    key = jax.random.PRNGKey(0)
    k1, k2 = jax.random.split(key)
    check(2, 4, 16, 16, k1)    # lane-aligned HW (roll conv path), C < 8
    check(3, 10, 12, 12, k2)   # HW % 128 != 0 (slice conv path), channel tail
    print("KERNEL_OK")
</pallas_src>

<mosaic_0001>
module attributes {stable_mosaic.version = 11 : i64} {
  func.func @k(%arg0: memref<8x128xf32, #tpu.memory_space<vmem>>, %arg1: memref<8x128xf32, #tpu.memory_space<vmem>>) attributes {dimension_semantics = [], scalar_prefetch = 0 : i64, scratch_operands = 0 : i64, tpu.core_type = #tpu.core_type<tc>} {
    %c0 = arith.constant 0 : index
    %c0_0 = arith.constant 0 : index
    %0 = vector.load %arg0[%c0, %c0_0] : memref<8x128xf32, #tpu.memory_space<vmem>>, vector<8x128xf32>
    %c1_i32 = arith.constant 1 : i32
    %1 = tpu.dynamic_rotate %0 by %c1_i32 dim 1 : vector<8x128xf32>, i32 -> vector<8x128xf32>
    %c0_1 = arith.constant 0 : index
    %c0_2 = arith.constant 0 : index
    %2 = vector.load %arg1[%c0_1, %c0_2] : memref<8x128xf32, #tpu.memory_space<vmem>>, vector<8x128xf32>
    tpu.vector_store %arg1[%c0_1, %c0_2], %1 {strides = array<i32>} : memref<8x128xf32, #tpu.memory_space<vmem>>, vector<8x128xf32>,
    return
  }
}

module attributes {stable_mosaic.version = 11 : i64} {
  func.func @spatial_gate_kernel(%arg0: i32, %arg1: memref<98xf32, #tpu.memory_space<smem>>, %arg2: memref<1xf32, #tpu.memory_space<smem>>, %arg3: memref<2x4x256xf32, #tpu.memory_space<vmem>>, %arg4: memref<2x4x256xf32, #tpu.memory_space<vmem>>, %arg5: memref<2x2x512xf32, #tpu.memory_space<vmem>>) attributes {dimension_semantics = [#tpu.dimension_semantics<parallel>], iteration_bounds = array<i64: 1>, scalar_prefetch = 0 : i64, scratch_operands = 1 : i64, tpu.core_type = #tpu.core_type<tc>, window_params = [{transform_indices = @transform_0, window_bounds = array<i64: 98>}, {transform_indices = @transform_1, window_bounds = array<i64: 1>}, {transform_indices = @transform_2, window_bounds = array<i64: 2, 4, 256>}, {transform_indices = @transform_3, window_bounds = array<i64: 2, 4, 256>}]} {
    %cst = arith.constant 0xFF800000 : f32
    %0 = vector.broadcast %cst : f32 to vector<4x256xf32>
    %cst_0 = arith.constant 0.000000e+00 : f32
    %1 = vector.broadcast %cst_0 : f32 to vector<4x256xf32>
    %c0_i32 = arith.constant 0 : i32
    %c0_i32_1 = arith.constant 0 : i32
    %c4_i32 = arith.constant 4 : i32
    %2 = arith.muli %c0_i32_1, %c4_i32 : i32
    %3 = tpu.assume_multiple %2, 4 : i32
    %c0_i32_2 = arith.constant 0 : i32
    %c0_i32_3 = arith.constant 0 : i32
    %4 = tpu.memref_slice %arg3[%c0_i32, %c0_i32_2, %c0_i32_3] : memref<2x4x256xf32, #tpu.memory_space<vmem>> -> memref<1x4x256xf32, #tpu.memory_space<vmem>>
    %5 = tpu.memref_squeeze %4 : memref<1x4x256xf32, #tpu.memory_space<vmem>> -> memref<4x256xf32, #tpu.memory_space<vmem>>
    %6 = arith.index_cast %3 : i32 to index
    %c0 = arith.constant 0 : index
    %7 = vector.load %5[%6, %c0] : memref<4x256xf32, #tpu.memory_space<vmem>>, vector<4x256xf32>
    %8 = arith.maximumf %0, %7 : vector<4x256xf32>
    %9 = arith.addf %1, %7 : vector<4x256xf32>
    %c1_i32 = arith.constant 1 : i32
    %cst_4 = arith.constant dense<0xFF800000> : vector<256xf32>
    %10 = vector.multi_reduction <maximumf>, %8, %cst_4 [0] : vector<4x256xf32> to vector<256xf32>
    %11 = vector.shape_cast %10 : vector<256xf32> to vector<1x256xf32>
    %cst_5 = arith.constant dense<0.000000e+00> : vector<256xf32>
    %12 = vector.multi_reduction <add>, %9, %cst_5 [0] : vector<4x256xf32> to vector<256xf32>
    %13 = vector.shape_cast %12 : vector<256xf32> to vector<1x256xf32>
    %c0_6 = arith.constant 0 : index
    %c0_7 = arith.constant 0 : index
    %c128 = arith.constant 128 : index
    %14 = vector.load %arg5[%c0_6, %c0_7, %c128] : memref<2x2x512xf32, #tpu.memory_space<vmem>>, vector<1x1x256xf32>
    %15 = vector.shape_cast %14 : vector<1x1x256xf32> to vector<1x256xf32>
    %16 = vector.shape_cast %11 : vector<1x256xf32> to vector<1x1x256xf32>
    tpu.vector_store %arg5[%c0_6, %c0_7, %c128], %16 {strides = array<i32>} : memref<2x2x512xf32, #tpu.memory_space<vmem>>, vector<1x1x256xf32>,
    %cst_8 = arith.constant 2.500000e-01 : f32
    %17 = vector.broadcast %cst_8 : f32 to vector<1x256xf32>
    %18 = arith.mulf %13, %17 : vector<1x256xf32>
    %c1 = arith.constant 1 : index
    %c0_9 = arith.constant 0 : index
    %c128_10 = arith.constant 128 : index
    %19 = vector.load %arg5[%c1, %c0_9, %c128_10] : memref<2x2x512xf32, #tpu.memory_space<vmem>>, vector<1x1x256xf32>
    %20 = vector.shape_cast %19 : vector<1x1x256xf32> to vector<1x256xf32>
    %21 = vector.shape_cast %18 : vector<1x256xf32> to vector<1x1x256xf32>
    tpu.vector_store %arg5[%c1, %c0_9, %c128_10], %21 {strides = array<i32>} : memref<2x2x512xf32, #tpu.memory_space<vmem>>, vector<1x1x256xf32>,
    %cst_11 = arith.constant 0xFF800000 : f32
    %22 = vector.broadcast %cst_11 : f32 to vector<4x256xf32>
    %cst_12 = arith.constant 0.000000e+00 : f32
    %23 = vector.broadcast %cst_12 : f32 to vector<4x256xf32>
    %c1_i32_13 = arith.constant 1 : i32
    %c0_i32_14 = arith.constant 0 : i32
    %c4_i32_15 = arith.constant 4 : i32
    %24 = arith.muli %c0_i32_14, %c4_i32_15 : i32
    %25 = tpu.assume_multiple %24, 4 : i32
    %c0_i32_16 = arith.constant 0 : i32
    %c0_i32_17 = arith.constant 0 : i32
    %26 = tpu.memref_slice %arg3[%c1_i32_13, %c0_i32_16, %c0_i32_17] : memref<2x4x256xf32, #tpu.memory_space<vmem>> -> memref<1x4x256xf32, #tpu.memory_space<vmem>>
    %27 = tpu.memref_squeeze %26 : memref<1x4x256xf32, #tpu.memory_space<vmem>> -> memref<4x256xf32, #tpu.memory_space<vmem>>
    %28 = arith.index_cast %25 : i32 to index
    %c0_18 = arith.constant 0 : index
    %29 = vector.load %27[%28, %c0_18] : memref<4x256xf32, #tpu.memory_space<vmem>>, vector<4x256xf32>
    %30 = arith.maximumf %22, %29 : vector<4x256xf32>
    %31 = arith.addf %23, %29 : vector<4x256xf32>
    %c1_i32_19 = arith.constant 1 : i32
    %cst_20 = arith.constant dense<0xFF800000> : vector<256xf32>
    %32 = vector.multi_reduction <maximumf>, %30, %cst_20 [0] : vector<4x256xf32> to vector<256xf32>
    %33 = vector.shape_cast %32 : vector<256xf32> to vector<1x256xf32>
    %cst_21 = arith.constant dense<0.000000e+00> : vector<256xf32>
    %34 = vector.multi_reduction <add>, %31, %cst_21 [0] : vector<4x256xf32> to vector<256xf32>
    %35 = vector.shape_cast %34 : vector<256xf32> to vector<1x256xf32>
    %c0_22 = arith.constant 0 : index
    %c1_23 = arith.constant 1 : index
    %c128_24 = arith.constant 128 : index
    %36 = vector.load %arg5[%c0_22, %c1_23, %c128_24] : memref<2x2x512xf32, #tpu.memory_space<vmem>>, vector<1x1x256xf32>
    %37 = vector.shape_cast %36 : vector<1x1x256xf32> to vector<1x256xf32>
    %38 = vector.shape_cast %33 : vector<1x256xf32> to vector<1x1x256xf32>
    tpu.vector_store %arg5[%c0_22, %c1_23, %c128_24], %38 {strides = array<i32>} : memref<2x2x512xf32, #tpu.memory_space<vmem>>, vector<1x1x256xf32>,
    %cst_25 = arith.constant 2.500000e-01 : f32
    %39 = vector.broadcast %cst_25 : f32 to vector<1x256xf32>
    %40 = arith.mulf %35, %39 : vector<1x256xf32>
    %c1_26 = arith.constant 1 : index
    %c1_27 = arith.constant 1 : index
    %c128_28 = arith.constant 128 : index
    %41 = vector.load %arg5[%c1_26, %c1_27, %c128_28] : memref<2x2x512xf32, #tpu.memory_space<vmem>>, vector<1x1x256xf32>
    %42 = vector.shape_cast %41 : vector<1x1x256xf32> to vector<1x256xf32>
    %43 = vector.shape_cast %40 : vector<1x256xf32> to vector<1x1x256xf32>
    tpu.vector_store %arg5[%c1_26, %c1_27, %c128_28], %43 {strides = array<i32>} : memref<2x2x512xf32, #tpu.memory_space<vmem>>, vector<1x1x256xf32>,
    %cst_29 = arith.constant 0.000000e+00 : f32
    %44 = vector.broadcast %cst_29 : f32 to vector<2x2x128xf32>
    %c0_30 = arith.constant 0 : index
    %c0_31 = arith.constant 0 : index
    %c0_32 = arith.constant 0 : index
    %45 = vector.load %arg5[%c0_30, %c0_31, %c0_32] : memref<2x2x512xf32, #tpu.memory_space<vmem>>, vector<2x2x128xf32>
    tpu.vector_store %arg5[%c0_30, %c0_31, %c0_32], %44 {strides = array<i32>} : memref<2x2x512xf32, #tpu.memory_space<vmem>>, vector<2x2x128xf32>,
    %cst_33 = arith.constant 0.000000e+00 : f32
    %46 = vector.broadcast %cst_33 : f32 to vector<2x2x128xf32>
    %c0_34 = arith.constant 0 : index
    %c0_35 = arith.constant 0 : index
    %c384 = arith.constant 384 : index
    %47 = vector.load %arg5[%c0_34, %c0_35, %c384] : memref<2x2x512xf32, #tpu.memory_space<vmem>>, vector<2x2x128xf32>
    tpu.vector_store %arg5[%c0_34, %c0_35, %c384], %46 {strides = array<i32>} : memref<2x2x512xf32, #tpu.memory_space<vmem>>, vector<2x2x128xf32>,
    %cst_36 = arith.constant 0.000000e+00 : f32
    %48 = vector.broadcast %cst_36 : f32 to vector<2x256xf32>
    %cst_37 = arith.constant 0.000000e+00 : f32
    %49 = vector.broadcast %cst_37 : f32 to vector<2x256xf32>
    %cst_38 = arith.constant 0.000000e+00 : f32
    %50 = vector.broadcast %cst_38 : f32 to vector<2x256xf32>
    %cst_39 = arith.constant 0.000000e+00 : f32
    %51 = vector.broadcast %cst_39 : f32 to vector<2x256xf32>
    %cst_40 = arith.constant 0.000000e+00 : f32
    %52 = vector.broadcast %cst_40 : f32 to vector<2x256xf32>
    %cst_41 = arith.constant 0.000000e+00 : f32
    %53 = vector.broadcast %cst_41 : f32 to vector<2x256xf32>
    %cst_42 = arith.constant 0.000000e+00 : f32
    %54 = vector.broadcast %cst_42 : f32 to vector<2x256xf32>
    %c0_43 = arith.constant 0 : index
    %55 = memref.load %arg1[%c0_43] : memref<98xf32, #tpu.memory_space<smem>>
    %c0_44 = arith.constant 0 : index
    %c0_45 = arith.constant 0 : index
    %c77 = arith.constant 77 : index
    %56 = vector.load %arg5[%c0_44, %c0_45, %c77] : memref<2x2x512xf32, #tpu.memory_space<vmem>>, vector<1x2x256xf32>
    %57 = vector.shape_cast %56 : vector<1x2x256xf32> to vector<2x256xf32>
    %58 = vector.broadcast %55 : f32 to vector<2x256xf32>
    %59 = arith.mulf %57, %58 : vector<2x256xf32>
    %60 = arith.addf %48, %59 : vector<2x256xf32>
    %c1_46 = arith.constant 1 : index
    %61 = memref.load %arg1[%c1_46] : memref<98xf32, #tpu.memory_space<smem>>
    %c0_47 = arith.constant 0 : index
    %c0_48 = arith.constant 0 : index
    %c78 = arith.constant 78 : index
    %62 = vector.load %arg5[%c0_47, %c0_48, %c78] : memref<2x2x512xf32, #tpu.memory_space<vmem>>, vector<1x2x256xf32>
    %63 = vector.shape_cast %62 : vector<1x2x256xf32> to vector<2x256xf32>
    %64 = vector.broadcast %61 : f32 to vector<2x256xf32>
    %65 = arith.mulf %63, %64 : vector<2x256xf32>
    %66 = arith.addf %49, %65 : vector<2x256xf32>
    %c2 = arith.constant 2 : index
    %67 = memref.load %arg1[%c2] : memref<98xf32, #tpu.memory_space<smem>>
    %c0_49 = arith.constant 0 : index
    %c0_50 = arith.constant 0 : index
    %c79 = arith.constant 79 : index
    %68 = vector.load %arg5[%c0_49, %c0_50, %c79] : memref<2x2x512xf32, #tpu.memory_space<vmem>>, vector<1x2x256xf32>
    %69 = vector.shape_cast %68 : vector<1x2x256xf32> to vector<2x256xf32>
    %70 = vector.broadcast %67 : f32 to vector<2x256xf32>
    %71 = arith.mulf %69, %70 : vector<2x256xf32>
    %72 = arith.addf %50, %71 : vector<2x256xf32>
    %c3 = arith.constant 3 : index
    %73 = memref.load %arg1[%c3] : memref<98xf32, #tpu.memory_space<smem>>
    %c0_51 = arith.constant 0 : index
    %c0_52 = arith.constant 0 : index
    %c80 = arith.constant 80 : index
    %74 = vector.load %arg5[%c0_51, %c0_52, %c80] : memref<2x2x512xf32, #tpu.memory_space<vmem>>, vector<1x2x256xf32>
    %75 = vector.shape_cast %74 : vector<1x2x256xf32> to vector<2x256xf32>
    %76 = vector.broadcast %73 : f32 to vector<2x256xf32>
    %77 = arith.mulf %75, %76 : vector<2x256xf32>
    %78 = arith.addf %51, %77 : vector<2x256xf32>
    %c4 = arith.constant 4 : index
    %79 = memref.load %arg1[%c4] : memref<98xf32, #tpu.memory_space<smem>>
    %c0_53 = arith.constant 0 : index
    %c0_54 = arith.constant 0 : index
    %c81 = arith.constant 81 : index
    %80 = vector.load %arg5[%c0_53, %c0_54, %c81] : memref<2x2x512xf32, #tpu.memory_space<vmem>>, vector<1x2x256xf32>
    %81 = vector.shape_cast %80 : vector<1x2x256xf32> to vector<2x256xf32>
    %82 = vector.broadcast %79 : f32 to vector<2x256xf32>
    %83 = arith.mulf %81, %82 : vector<2x256xf32>
    %84 = arith.addf %52, %83 : vector<2x256xf32>
    %c5 = arith.constant 5 : index
    %85 = memref.load %arg1[%c5] : memref<98xf32, #tpu.memory_space<smem>>
    %c0_55 = arith.constant 0 : index
    %c0_56 = arith.constant 0 : index
    %c82 = arith.constant 82 : index
    %86 = vector.load %arg5[%c0_55, %c0_56, %c82] : memref<2x2x512xf32, #tpu.memory_space<vmem>>, vector<1x2x256xf32>
    %87 = vector.shape_cast %86 : vector<1x2x256xf32> to vector<2x256xf32>
    %88 = vector.broadcast %85 : f32 to vector<2x256xf32>
    %89 = arith.mulf %87, %88 : vector<2x256xf32>
    %90 = arith.addf %53, %89 : vector<2x256xf32>
    %c6 = arith.constant 6 : index
    %91 = memref.load %arg1[%c6] : memref<98xf32, #tpu.memory_space<smem>>
    %c0_57 = arith.constant 0 : index
    %c0_58 = arith.constant 0 : index
    %c83 = arith.constant 83 : index
    %92 = vector.load %arg5[%c0_57, %c0_58, %c83] : memref<2x2x512xf32, #tpu.memory_space<vmem>>, vector<1x2x256xf32>
    %93 = vector.shape_cast %92 : vector<1x2x256xf32> to vector<2x256xf32>
    %94 = vector.broadcast %91 : f32 to vector<2x256xf32>
    %95 = arith.mulf %93, %94 : vector<2x256xf32>
    %96 = arith.addf %54, %95 : vector<2x256xf32>
    %c7 = arith.constant 7 : index
    %97 = memref.load %arg1[%c7] : memref<98xf32, #tpu.memory_space<smem>>
    %c0_59 = arith.constant 0 : index
    %c0_60 = arith.constant 0 : index
    %c93 = arith.constant 93 : index
    %98 = vector.load %arg5[%c0_59, %c0_60, %c93] : memref<2x2x512xf32, #tpu.memory_space<vmem>>, vector<1x2x256xf32>
    %99 = vector.shape_cast %98 : vector<1x2x256xf32> to vector<2x256xf32>
    %100 = vector.broadcast %97 : f32 to vector<2x256xf32>
    %101 = arith.mulf %99, %100 : vector<2x256xf32>
    %102 = arith.addf %60, %101 : vector<2x256xf32>
    %c8 = arith.constant 8 : index
    %103 = memref.load %arg1[%c8] : memref<98xf32, #tpu.memory_space<smem>>
    %c0_61 = arith.constant 0 : index
    %c0_62 = arith.constant 0 : index
    %c94 = arith.constant 94 : index
    %104 = vector.load %arg5[%c0_61, %c0_62, %c94] : memref<2x2x512xf32, #tpu.memory_space<vmem>>, vector<1x2x256xf32>
    %105 = vector.shape_cast %104 : vector<1x2x256xf32> to vector<2x256xf32>
    %106 = vector.broadcast %103 : f32 to vector<2x256xf32>
    %107 = arith.mulf %105, %106 : vector<2x256xf32>
    %108 = arith.addf %66, %107 : vector<2x256xf32>
    %c9 = arith.constant 9 : index
    %109 = memref.load %arg1[%c9] : memref<98xf32, #tpu.memory_space<smem>>
    %c0_63 = arith.constant 0 : index
    %c0_64 = arith.constant 0 : index
    %c95 = arith.constant 95 : index
    %110 = vector.load %arg5[%c0_63, %c0_64, %c95] : memref<2x2x512xf32, #tpu.memory_space<vmem>>, vector<1x2x256xf32>
    %111 = vector.shape_cast %110 : vector<1x2x256xf32> to vector<2x256xf32>
    %112 = vector.broadcast %109 : f32 to vector<2x256xf32>
    %113 = arith.mulf %111, %112 : vector<2x256xf32>
    %114 = arith.addf %72, %113 : vector<2x256xf32>
    %c10 = arith.constant 10 : index
    %115 = memref.load %arg1[%c10] : memref<98xf32, #tpu.memory_space<smem>>
    %c0_65 = arith.constant 0 : index
    %c0_66 = arith.constant 0 : index
    %c96 = arith.constant 96 : index
    %116 = vector.load %arg5[%c0_65, %c0_66, %c96] : memref<2x2x512xf32, #tpu.memory_space<vmem>>, vector<1x2x256xf32>
    %117 = vector.shape_cast %116 : vector<1x2x256xf32> to vector<2x256xf32>
    %118 = vector.broadcast %115 : f32 to vector<2x256xf32>
    %119 = arith.mulf %117, %118 : vector<2x256xf32>
    %120 = arith.addf %78, %119 : vector<2x256xf32>
    %c11 = arith.constant 11 : index
    %121 = memref.load %arg1[%c11] : memref<98xf32, #tpu.memory_space<smem>>
    %c0_67 = arith.constant 0 : index
    %c0_68 = arith.constant 0 : index
    %c97 = arith.constant 97 : index
    %122 = vector.load %arg5[%c0_67, %c0_68, %c97] : memref<2x2x512xf32, #tpu.memory_space<vmem>>, vector<1x2x256xf32>
    %123 = vector.shape_cast %122 : vector<1x2x256xf32> to vector<2x256xf32>
    %124 = vector.broadcast %121 : f32 to vector<2x256xf32>
    %125 = arith.mulf %123, %124 : vector<2x256xf32>
    %126 = arith.addf %84, %125 : vector<2x256xf32>
    %c12 = arith.constant 12 : index
    %127 = memref.load %arg1[%c12] : memref<98xf32, #tpu.memory_space<smem>>
    %c0_69 = arith.constant 0 : index
    %c0_70 = arith.constant 0 : index
    %c98 = arith.constant 98 : index
    %128 = vector.load %arg5[%c0_69, %c0_70, %c98] : memref<2x2x512xf32, #tpu.memory_space<vmem>>, vector<1x2x256xf32>
    %129 = vector.shape_cast %128 : vector<1x2x256xf32> to vector<2x256xf32>
    %130 = vector.broadcast %127 : f32 to vector<2x256xf32>
    %131 = arith.mulf %129, %130 : vector<2x256xf32>
    %132 = arith.addf %90, %131 : vector<2x256xf32>
    %c13 = arith.constant 13 : index
    %133 = memref.load %arg1[%c13] : memref<98xf32, #tpu.memory_space<smem>>
    %c0_71 = arith.constant 0 : index
    %c0_72 = arith.constant 0 : index
    %c99 = arith.constant 99 : index
    %134 = vector.load %arg5[%c0_71, %c0_72, %c99] : memref<2x2x512xf32, #tpu.memory_space<vmem>>, vector<1x2x256xf32>
    %135 = vector.shape_cast %134 : vector<1x2x256xf32> to vector<2x256xf32>
    %136 = vector.broadcast %133 : f32 to vector<2x256xf32>
    %137 = arith.mulf %135, %136 : vector<2x256xf32>
    %138 = arith.addf %96, %137 : vector<2x256xf32>
    %c14 = arith.constant 14 : index
    %139 = memref.load %arg1[%c14] : memref<98xf32, #tpu.memory_space<smem>>
    %c0_73 = arith.constant 0 : index
    %c0_74 = arith.constant 0 : index
    %c109 = arith.constant 109 : index
    %140 = vector.load %arg5[%c0_73, %c0_74, %c109] : memref<2x2x512xf32, #tpu.memory_space<vmem>>, vector<1x2x256xf32>
    %141 = vector.shape_cast %140 : vector<1x2x256xf32> to vector<2x256xf32>
    %142 = vector.broadcast %139 : f32 to vector<2x256xf32>
    %143 = arith.mulf %141, %142 : vector<2x256xf32>
    %144 = arith.addf %102, %143 : vector<2x256xf32>
    %c15 = arith.constant 15 : index
    %145 = memref.load %arg1[%c15] : memref<98xf32, #tpu.memory_space<smem>>
    %c0_75 = arith.constant 0 : index
    %c0_76 = arith.constant 0 : index
    %c110 = arith.constant 110 : index
    %146 = vector.load %arg5[%c0_75, %c0_76, %c110] : memref<2x2x512xf32, #tpu.memory_space<vmem>>, vector<1x2x256xf32>
    %147 = vector.shape_cast %146 : vector<1x2x256xf32> to vector<2x256xf32>
    %148 = vector.broadcast %145 : f32 to vector<2x256xf32>
    %149 = arith.mulf %147, %148 : vector<2x256xf32>
    %150 = arith.addf %108, %149 : vector<2x256xf32>
    %c16 = arith.constant 16 : index
    %151 = memref.load %arg1[%c16] : memref<98xf32, #tpu.memory_space<smem>>
    %c0_77 = arith.constant 0 : index
    %c0_78 = arith.constant 0 : index
    %c111 = arith.constant 111 : index
    %152 = vector.load %arg5[%c0_77, %c0_78, %c111] : memref<2x2x512xf32, #tpu.memory_space<vmem>>, vector<1x2x256xf32>
    %153 = vector.shape_cast %152 : vector<1x2x256xf32> to vector<2x256xf32>
    %154 = vector.broadcast %151 : f32 to vector<2x256xf32>
    %155 = arith.mulf %153, %154 : vector<2x256xf32>
    %156 = arith.addf %114, %155 : vector<2x256xf32>
    %c17 = arith.constant 17 : index
    %157 = memref.load %arg1[%c17] : memref<98xf32, #tpu.memory_space<smem>>
    %c0_79 = arith.constant 0 : index
    %c0_80 = arith.constant 0 : index
    %c112 = arith.constant 112 : index
    %158 = vector.load %arg5[%c0_79, %c0_80, %c112] : memref<2x2x512xf32, #tpu.memory_space<vmem>>, vector<1x2x256xf32>
    %159 = vector.shape_cast %158 : vector<1x2x256xf32> to vector<2x256xf32>
    %160 = vector.broadcast %157 : f32 to vector<2x256xf32>
    %161 = arith.mulf %159, %160 : vector<2x256xf32>
    %162 = arith.addf %120, %161 : vector<2x256xf32>
    %c18 = arith.constant 18 : index
    %163 = memref.load %arg1[%c18] : memref<98xf32, #tpu.memory_space<smem>>
    %c0_81 = arith.constant 0 : index
    %c0_82 = arith.constant 0 : index
    %c113 = arith.constant 113 : index
    %164 = vector.load %arg5[%c0_81, %c0_82, %c113] : memref<2x2x512xf32, #tpu.memory_space<vmem>>, vector<1x2x256xf32>
    %165 = vector.shape_cast %164 : vector<1x2x256xf32> to vector<2x256xf32>
    %166 = vector.broadcast %163 : f32 to vector<2x256xf32>
    %167 = arith.mulf %165, %166 : vector<2x256xf32>
    %168 = arith.addf %126, %167 : vector<2x256xf32>
    %c19 = arith.constant 19 : index
    %169 = memref.load %arg1[%c19] : memref<98xf32, #tpu.memory_space<smem>>
    %c0_83 = arith.constant 0 : index
    %c0_84 = arith.constant 0 : index
    %c114 = arith.constant 114 : index
    %170 = vector.load %arg5[%c0_83, %c0_84, %c114] : memref<2x2x512xf32, #tpu.memory_space<vmem>>, vector<1x2x256xf32>
    %171 = vector.shape_cast %170 : vector<1x2x256xf32> to vector<2x256xf32>
    %172 = vector.broadcast %169 : f32 to vector<2x256xf32>
    %173 = arith.mulf %171, %172 : vector<2x256xf32>
    %174 = arith.addf %132, %173 : vector<2x256xf32>
    %c20 = arith.constant 20 : index
    %175 = memref.load %arg1[%c20] : memref<98xf32, #tpu.memory_space<smem>>
    %c0_85 = arith.constant 0 : index
    %c0_86 = arith.constant 0 : index
    %c115 = arith.constant 115 : index
    %176 = vector.load %arg5[%c0_85, %c0_86, %c115] : memref<2x2x512xf32, #tpu.memory_space<vmem>>, vector<1x2x256xf32>
    %177 = vector.shape_cast %176 : vector<1x2x256xf32> to vector<2x256xf32>
    %178 = vector.broadcast %175 : f32 to vector<2x256xf32>
    %179 = arith.mulf %177, %178 : vector<2x256xf32>
    %180 = arith.addf %138, %179 : vector<2x256xf32>
    %c21 = arith.constant 21 : index
    %181 = memref.load %arg1[%c21] : memref<98xf32, #tpu.memory_space<smem>>
    %c0_87 = arith.constant 0 : index
    %c0_88 = arith.constant 0 : index
    %c125 = arith.constant 125 : index
    %182 = vector.load %arg5[%c0_87, %c0_88, %c125] : memref<2x2x512xf32, #tpu.memory_space<vmem>>, vector<1x2x256xf32>
    %183 = vector.shape_cast %182 : vector<1x2x256xf32> to vector<2x256xf32>
    %184 = vector.broadcast %181 : f32 to vector<2x256xf32>
    %185 = arith.mulf %183, %184 : vector<2x256xf32>
    %186 = arith.addf %144, %185 : vector<2x256xf32>
    %c22 = arith.constant 22 : index
    %187 = memref.load %arg1[%c22] : memref<98xf32, #tpu.memory_space<smem>>
    %c0_89 = arith.constant 0 : index
    %c0_90 = arith.constant 0 : index
    %c126 = arith.constant 126 : index
    %188 = vector.load %arg5[%c0_89, %c0_90, %c126] : memref<2x2x512xf32, #tpu.memory_space<vmem>>, vector<1x2x256xf32>
    %189 = vector.shape_cast %188 : vector<1x2x256xf32> to vector<2x256xf32>
    %190 = vector.broadcast %187 : f32 to vector<2x256xf32>
    %191 = arith.mulf %189, %190 : vector<2x256xf32>
    %192 = arith.addf %150, %191 : vector<2x256xf32>
    %c23 = arith.constant 23 : index
    %193 = memref.load %arg1[%c23] : memref<98xf32, #tpu.memory_space<smem>>
    %c0_91 = arith.constant 0 : index
    %c0_92 = arith.constant 0 : index
    %c127 = arith.constant 127 : index
    %194 = vector.load %arg5[%c0_91, %c0_92, %c127] : memref<2x2x512xf32, #tpu.memory_space<vmem>>, vector<1x2x256xf32>
    %195 = vector.shape_cast %194 : vector<1x2x256xf32> to vector<2x256xf32>
    %196 = vector.broadcast %193 : f32 to vector<2x256xf32>
    %197 = arith.mulf %195, %196 : vector<2x256xf32>
    %198 = arith.addf %156, %197 : vector<2x256xf32>
    %c24 = arith.constant 24 : index
    %199 = memref.load %arg1[%c24] : memref<98xf32, #tpu.memory_space<smem>>
    %c0_93 = arith.constant 0 : index
    %c0_94 = arith.constant 0 : index
    %c128_95 = arith.constant 128 : index
    %200 = vector.load %arg5[%c0_93, %c0_94, %c128_95] : memref<2x2x512xf32, #tpu.memory_space<vmem>>, vector<1x2x256xf32>
    %201 = vector.shape_cast %200 : vector<1x2x256xf32> to vector<2x256xf32>
    %202 = vector.broadcast %199 : f32 to vector<2x256xf32>
    %203 = arith.mulf %201, %202 : vector<2x256xf32>
    %204 = arith.addf %162, %203 : vector<2x256xf32>
    %c25 = arith.constant 25 : index
    %205 = memref.load %arg1[%c25] : memref<98xf32, #tpu.memory_space<smem>>
    %c0_96 = arith.constant 0 : index
    %c0_97 = arith.constant 0 : index
    %c129 = arith.constant 129 : index
    %206 = vector.load %arg5[%c0_96, %c0_97, %c129] : memref<2x2x512xf32, #tpu.memory_space<vmem>>, vector<1x2x256xf32>
    %207 = vector.shape_cast %206 : vector<1x2x256xf32> to vector<2x256xf32>
    %208 = vector.broadcast %205 : f32 to vector<2x256xf32>
    %209 = arith.mulf %207, %208 : vector<2x256xf32>
    %210 = arith.addf %168, %209 : vector<2x256xf32>
    %c26 = arith.constant 26 : index
    %211 = memref.load %arg1[%c26] : memref<98xf32, #tpu.memory_space<smem>>
    %c0_98 = arith.constant 0 : index
    %c0_99 = arith.constant 0 : index
    %c130 = arith.constant 130 : index
    %212 = vector.load %arg5[%c0_98, %c0_99, %c130] : memref<2x2x512xf32, #tpu.memory_space<vmem>>, vector<1x2x256xf32>
    %213 = vector.shape_cast %212 : vector<1x2x256xf32> to vector<2x256xf32>
    %214 = vector.broadcast %211 : f32 to vector<2x256xf32>
    %215 = arith.mulf %213, %214 : vector<2x256xf32>
    %216 = arith.addf %174, %215 : vector<2x256xf32>
    %c27 = arith.constant 27 : index
    %217 = memref.load %arg1[%c27] : memref<98xf32, #tpu.memory_space<smem>>
    %c0_100 = arith.constant 0 : index
    %c0_101 = arith.constant 0 : index
    %c131 = arith.constant 131 : index
    %218 = vector.load %arg5[%c0_100, %c0_101, %c131] : memref<2x2x512xf32, #tpu.memory_space<vmem>>, vector<1x2x256xf32>
    %219 = vector.shape_cast %218 : vector<1x2x256xf32> to vector<2x256xf32>
    %220 = vector.broadcast %217 : f32 to vector<2x256xf32>
    %221 = arith.mulf %219, %220 : vector<2x256xf32>
    %222 = arith.addf %180, %221 : vector<2x256xf32>
    %c28 = arith.constant 28 : index
    %223 = memref.load %arg1[%c28] : memref<98xf32, #tpu.memory_space<smem>>
    %c0_102 = arith.constant 0 : index
    %c0_103 = arith.constant 0 : index
    %c141 = arith.constant 141 : index
    %224 = vector.load %arg5[%c0_102, %c0_103, %c141] : memref<2x2x512xf32, #tpu.memory_space<vmem>>, vector<1x2x256xf32>
    %225 = vector.shape_cast %224 : vector<1x2x256xf32> to vector<2x256xf32>
    %226 = vector.broadcast %223 : f32 to vector<2x256xf32>
    %227 = arith.mulf %225, %226 : vector<2x256xf32>
    %228 = arith.addf %186, %227 : vector<2x256xf32>
    %c29 = arith.constant 29 : index
    %229 = memref.load %arg1[%c29] : memref<98xf32, #tpu.memory_space<smem>>
    %c0_104 = arith.constant 0 : index
    %c0_105 = arith.constant 0 : index
    %c142 = arith.constant 142 : index
    %230 = vector.load %arg5[%c0_104, %c0_105, %c142] : memref<2x2x512xf32, #tpu.memory_space<vmem>>, vector<1x2x256xf32>
    %231 = vector.shape_cast %230 : vector<1x2x256xf32> to vector<2x256xf32>
    %232 = vector.broadcast %229 : f32 to vector<2x256xf32>
    %233 = arith.mulf %231, %232 : vector<2x256xf32>
    %234 = arith.addf %192, %233 : vector<2x256xf32>
    %c30 = arith.constant 30 : index
    %235 = memref.load %arg1[%c30] : memref<98xf32, #tpu.memory_space<smem>>
    %c0_106 = arith.constant 0 : index
    %c0_107 = arith.constant 0 : index
    %c143 = arith.constant 143 : index
    %236 = vector.load %arg5[%c0_106, %c0_107, %c143] : memref<2x2x512xf32, #tpu.memory_space<vmem>>, vector<1x2x256xf32>
    %237 = vector.shape_cast %236 : vector<1x2x256xf32> to vector<2x256xf32>
    %238 = vector.broadcast %235 : f32 to vector<2x256xf32>
    %239 = arith.mulf %237, %238 : vector<2x256xf32>
    %240 = arith.addf %198, %239 : vector<2x256xf32>
    %c31 = arith.constant 31 : index
    %241 = memref.load %arg1[%c31] : memref<98xf32, #tpu.memory_space<smem>>
    %c0_108 = arith.constant 0 : index
    %c0_109 = arith.constant 0 : index
    %c144 = arith.constant 144 : index
    %242 = vector.load %arg5[%c0_108, %c0_109, %c144] : memref<2x2x512xf32, #tpu.memory_space<vmem>>, vector<1x2x256xf32>
    %243 = vector.shape_cast %242 : vector<1x2x256xf32> to vector<2x256xf32>
    %244 = vector.broadcast %241 : f32 to vector<2x256xf32>
    %245 = arith.mulf %243, %244 : vector<2x256xf32>
    %246 = arith.addf %204, %245 : vector<2x256xf32>
    %c32 = arith.constant 32 : index
    %247 = memref.load %arg1[%c32] : memref<98xf32, #tpu.memory_space<smem>>
    %c0_110 = arith.constant 0 : index
    %c0_111 = arith.constant 0 : index
    %c145 = arith.constant 145 : index
    %248 = vector.load %arg5[%c0_110, %c0_111, %c145] : memref<2x2x512xf32, #tpu.memory_space<vmem>>, vector<1x2x256xf32>
    %249 = vector.shape_cast %248 : vector<1x2x256xf32> to vector<2x256xf32>
    %250 = vector.broadcast %247 : f32 to vector<2x256xf32>
    %251 = arith.mulf %249, %250 : vector<2x256xf32>
    %252 = arith.addf %210, %251 : vector<2x256xf32>
    %c33 = arith.constant 33 : index
    %253 = memref.load %arg1[%c33] : memref<98xf32, #tpu.memory_space<smem>>
    %c0_112 = arith.constant 0 : index
    %c0_113 = arith.constant 0 : index
    %c146 = arith.constant 146 : index
    %254 = vector.load %arg5[%c0_112, %c0_113, %c146] : memref<2x2x512xf32, #tpu.memory_space<vmem>>, vector<1x2x256xf32>
    %255 = vector.shape_cast %254 : vector<1x2x256xf32> to vector<2x256xf32>
    %256 = vector.broadcast %253 : f32 to vector<2x256xf32>
    %257 = arith.mulf %255, %256 : vector<2x256xf32>
    %258 = arith.addf %216, %257 : vector<2x256xf32>
    %c34 = arith.constant 34 : index
    %259 = memref.load %arg1[%c34] : memref<98xf32, #tpu.memory_space<smem>>
    %c0_114 = arith.constant 0 : index
    %c0_115 = arith.constant 0 : index
    %c147 = arith.constant 147 : index
    %260 = vector.load %arg5[%c0_114, %c0_115, %c147] : memref<2x2x512xf32, #tpu.memory_space<vmem>>, vector<1x2x256xf32>
    %261 = vector.shape_cast %260 : vector<1x2x256xf32> to vector<2x256xf32>
    %262 = vector.broadcast %259 : f32 to vector<2x256xf32>
    %263 = arith.mulf %261, %262 : vector<2x256xf32>
    %264 = arith.addf %222, %263 : vector<2x256xf32>
    %c35 = arith.constant 35 : index
    %265 = memref.load %arg1[%c35] : memref<98xf32, #tpu.memory_space<smem>>
    %c0_116 = arith.constant 0 : index
    %c0_117 = arith.constant 0 : index
    %c157 = arith.constant 157 : index
    %266 = vector.load %arg5[%c0_116, %c0_117, %c157] : memref<2x2x512xf32, #tpu.memory_space<vmem>>, vector<1x2x256xf32>
    %267 = vector.shape_cast %266 : vector<1x2x256xf32> to vector<2x256xf32>
    %268 = vector.broadcast %265 : f32 to vector<2x256xf32>
    %269 = arith.mulf %267, %268 : vector<2x256xf32>
    %270 = arith.addf %228, %269 : vector<2x256xf32>
    %c36 = arith.constant 36 : index
    %271 = memref.load %arg1[%c36] : memref<98xf32, #tpu.memory_space<smem>>
    %c0_118 = arith.constant 0 : index
    %c0_119 = arith.constant 0 : index
    %c158 = arith.constant 158 : index
    %272 = vector.load %arg5[%c0_118, %c0_119, %c158] : memref<2x2x512xf32, #tpu.memory_space<vmem>>, vector<1x2x256xf32>
    %273 = vector.shape_cast %272 : vector<1x2x256xf32> to vector<2x256xf32>
    %274 = vector.broadcast %271 : f32 to vector<2x256xf32>
    %275 = arith.mulf %273, %274 : vector<2x256xf32>
    %276 = arith.addf %234, %275 : vector<2x256xf32>
    %c37 = arith.constant 37 : index
    %277 = memref.load %arg1[%c37] : memref<98xf32, #tpu.memory_space<smem>>
    %c0_120 = arith.constant 0 : index
    %c0_121 = arith.constant 0 : index
    %c159 = arith.constant 159 : index
    %278 = vector.load %arg5[%c0_120, %c0_121, %c159] : memref<2x2x512xf32, #tpu.memory_space<vmem>>, vector<1x2x256xf32>
    %279 = vector.shape_cast %278 : vector<1x2x256xf32> to vector<2x256xf32>
    %280 = vector.broadcast %277 : f32 to vector<2x256xf32>
    %281 = arith.mulf %279, %280 : vector<2x256xf32>
    %282 = arith.addf %240, %281 : vector<2x256xf32>
    %c38 = arith.constant 38 : index
    %283 = memref.load %arg1[%c38] : memref<98xf32, #tpu.memory_space<smem>>
    %c0_122 = arith.constant 0 : index
    %c0_123 = arith.constant 0 : index
    %c160 = arith.constant 160 : index
    %284 = vector.load %arg5[%c0_122, %c0_123, %c160] : memref<2x2x512xf32, #tpu.memory_space<vmem>>, vector<1x2x256xf32>
    %285 = vector.shape_cast %284 : vector<1x2x256xf32> to vector<2x256xf32>
    %286 = vector.broadcast %283 : f32 to vector<2x256xf32>
    %287 = arith.mulf %285, %286 : vector<2x256xf32>
    %288 = arith.addf %246, %287 : vector<2x256xf32>
    %c39 = arith.constant 39 : index
    %289 = memref.load %arg1[%c39] : memref<98xf32, #tpu.memory_space<smem>>
    %c0_124 = arith.constant 0 : index
    %c0_125 = arith.constant 0 : index
    %c161 = arith.constant 161 : index
    %290 = vector.load %arg5[%c0_124, %c0_125, %c161] : memref<2x2x512xf32, #tpu.memory_space<vmem>>, vector<1x2x256xf32>
    %291 = vector.shape_cast %290 : vector<1x2x256xf32> to vector<2x256xf32>
    %292 = vector.broadcast %289 : f32 to vector<2x256xf32>
    %293 = arith.mulf %291, %292 : vector<2x256xf32>
    %294 = arith.addf %252, %293 : vector<2x256xf32>
    %c40 = arith.constant 40 : index
    %295 = memref.load %arg1[%c40] : memref<98xf32, #tpu.memory_space<smem>>
    %c0_126 = arith.constant 0 : index
    %c0_127 = arith.constant 0 : index
    %c162 = arith.constant 162 : index
    %296 = vector.load %arg5[%c0_126, %c0_127, %c162] : memref<2x2x512xf32, #tpu.memory_space<vmem>>, vector<1x2x256xf32>
    %297 = vector.shape_cast %296 : vector<1x2x256xf32> to vector<2x256xf32>
    %298 = vector.broadcast %295 : f32 to vector<2x256xf32>
    %299 = arith.mulf %297, %298 : vector<2x256xf32>
    %300 = arith.addf %258, %299 : vector<2x256xf32>
    %c41 = arith.constant 41 : index
    %301 = memref.load %arg1[%c41] : memref<98xf32, #tpu.memory_space<smem>>
    %c0_128 = arith.constant 0 : index
    %c0_129 = arith.constant 0 : index
    %c163 = arith.constant 163 : index
    %302 = vector.load %arg5[%c0_128, %c0_129, %c163] : memref<2x2x512xf32, #tpu.memory_space<vmem>>, vector<1x2x256xf32>
    %303 = vector.shape_cast %302 : vector<1x2x256xf32> to vector<2x256xf32>
    %304 = vector.broadcast %301 : f32 to vector<2x256xf32>
    %305 = arith.mulf %303, %304 : vector<2x256xf32>
    %306 = arith.addf %264, %305 : vector<2x256xf32>
    %c42 = arith.constant 42 : index
    %307 = memref.load %arg1[%c42] : memref<98xf32, #tpu.memory_space<smem>>
    %c0_130 = arith.constant 0 : index
    %c0_131 = arith.constant 0 : index
    %c173 = arith.constant 173 : index
    %308 = vector.load %arg5[%c0_130, %c0_131, %c173] : memref<2x2x512xf32, #tpu.memory_space<vmem>>, vector<1x2x256xf32>
    %309 = vector.shape_cast %308 : vector<1x2x256xf32> to vector<2x256xf32>
    %310 = vector.broadcast %307 : f32 to vector<2x256xf32>
    %311 = arith.mulf %309, %310 : vector<2x256xf32>
    %312 = arith.addf %270, %311 : vector<2x256xf32>
    %c43 = arith.constant 43 : index
    %313 = memref.load %arg1[%c43] : memref<98xf32, #tpu.memory_space<smem>>
    %c0_132 = arith.constant 0 : index
    %c0_133 = arith.constant 0 : index
    %c174 = arith.constant 174 : index
    %314 = vector.load %arg5[%c0_132, %c0_133, %c174] : memref<2x2x512xf32, #tpu.memory_space<vmem>>, vector<1x2x256xf32>
    %315 = vector.shape_cast %314 : vector<1x2x256xf32> to vector<2x256xf32>
    %316 = vector.broadcast %313 : f32 to vector<2x256xf32>
    %317 = arith.mulf %315, %316 : vector<2x256xf32>
    %318 = arith.addf %276, %317 : vector<2x256xf32>
    %c44 = arith.constant 44 : index
    %319 = memref.load %arg1[%c44] : memref<98xf32, #tpu.memory_space<smem>>
    %c0_134 = arith.constant 0 : index
    %c0_135 = arith.constant 0 : index
    %c175 = arith.constant 175 : index
    %320 = vector.load %arg5[%c0_134, %c0_135, %c175] : memref<2x2x512xf32, #tpu.memory_space<vmem>>, vector<1x2x256xf32>
    %321 = vector.shape_cast %320 : vector<1x2x256xf32> to vector<2x256xf32>
    %322 = vector.broadcast %319 : f32 to vector<2x256xf32>
    %323 = arith.mulf %321, %322 : vector<2x256xf32>
    %324 = arith.addf %282, %323 : vector<2x256xf32>
    %c45 = arith.constant 45 : index
    %325 = memref.load %arg1[%c45] : memref<98xf32, #tpu.memory_space<smem>>
    %c0_136 = arith.constant 0 : index
    %c0_137 = arith.constant 0 : index
    %c176 = arith.constant 176 : index
    %326 = vector.load %arg5[%c0_136, %c0_137, %c176] : memref<2x2x512xf32, #tpu.memory_space<vmem>>, vector<1x2x256xf32>
    %327 = vector.shape_cast %326 : vector<1x2x256xf32> to vector<2x256xf32>
    %328 = vector.broadcast %325 : f32 to vector<2x256xf32>
    %329 = arith.mulf %327, %328 : vector<2x256xf32>
    %330 = arith.addf %288, %329 : vector<2x256xf32>
    %c46 = arith.constant 46 : index
    %331 = memref.load %arg1[%c46] : memref<98xf32, #tpu.memory_space<smem>>
    %c0_138 = arith.constant 0 : index
    %c0_139 = arith.constant 0 : index
    %c177 = arith.constant 177 : index
    %332 = vector.load %arg5[%c0_138, %c0_139, %c177] : memref<2x2x512xf32, #tpu.memory_space<vmem>>, vector<1x2x256xf32>
    %333 = vector.shape_cast %332 : vector<1x2x256xf32> to vector<2x256xf32>
    %334 = vector.broadcast %331 : f32 to vector<2x256xf32>
    %335 = arith.mulf %333, %334 : vector<2x256xf32>
    %336 = arith.addf %294, %335 : vector<2x256xf32>
    %c47 = arith.constant 47 : index
    %337 = memref.load %arg1[%c47] : memref<98xf32, #tpu.memory_space<smem>>
    %c0_140 = arith.constant 0 : index
    %c0_141 = arith.constant 0 : index
    %c178 = arith.constant 178 : index
    %338 = vector.load %arg5[%c0_140, %c0_141, %c178] : memref<2x2x512xf32, #tpu.memory_space<vmem>>, vector<1x2x256xf32>
    %339 = vector.shape_cast %338 : vector<1x2x256xf32> to vector<2x256xf32>
    %340 = vector.broadcast %337 : f32 to vector<2x256xf32>
    %341 = arith.mulf %339, %340 : vector<2x256xf32>
    %342 = arith.addf %300, %341 : vector<2x256xf32>
    %c48 = arith.constant 48 : index
    %343 = memref.load %arg1[%c48] : memref<98xf32, #tpu.memory_space<smem>>
    %c0_142 = arith.constant 0 : index
    %c0_143 = arith.constant 0 : index
    %c179 = arith.constant 179 : index
    %344 = vector.load %arg5[%c0_142, %c0_143, %c179] : memref<2x2x512xf32, #tpu.memory_space<vmem>>, vector<1x2x256xf32>
    %345 = vector.shape_cast %344 : vector<1x2x256xf32> to vector<2x256xf32>
    %346 = vector.broadcast %343 : f32 to vector<2x256xf32>
    %347 = arith.mulf %345, %346 : vector<2x256xf32>
    %348 = arith.addf %306, %347 : vector<2x256xf32>
    %c49 = arith.constant 49 : index
    %349 = memref.load %arg1[%c49] : memref<98xf32, #tpu.memory_space<smem>>
    %c1_144 = arith.constant 1 : index
    %c0_145 = arith.constant 0 : index
    %c77_146 = arith.constant 77 : index
    %350 = vector.load %arg5[%c1_144, %c0_145, %c77_146] : memref<2x2x512xf32, #tpu.memory_space<vmem>>, vector<1x2x256xf32>
    %351 = vector.shape_cast %350 : vector<1x2x256xf32> to vector<2x256xf32>
    %352 = vector.broadcast %349 : f32 to vector<2x256xf32>
    %353 = arith.mulf %351, %352 : vector<2x256xf32>
    %354 = arith.addf %312, %353 : vector<2x256xf32>
    %c50 = arith.constant 50 : index
    %355 = memref.load %arg1[%c50] : memref<98xf32, #tpu.memory_space<smem>>
    %c1_147 = arith.constant 1 : index
    %c0_148 = arith.constant 0 : index
    %c78_149 = arith.constant 78 : index
    %356 = vector.load %arg5[%c1_147, %c0_148, %c78_149] : memref<2x2x512xf32, #tpu.memory_space<vmem>>, vector<1x2x256xf32>
    %357 = vector.shape_cast %356 : vector<1x2x256xf32> to vector<2x256xf32>
    %358 = vector.broadcast %355 : f32 to vector<2x256xf32>
    %359 = arith.mulf %357, %358 : vector<2x256xf32>
    %360 = arith.addf %318, %359 : vector<2x256xf32>
    %c51 = arith.constant 51 : index
    %361 = memref.load %arg1[%c51] : memref<98xf32, #tpu.memory_space<smem>>
    %c1_150 = arith.constant 1 : index
    %c0_151 = arith.constant 0 : index
    %c79_152 = arith.constant 79 : index
    %362 = vector.load %arg5[%c1_150, %c0_151, %c79_152] : memref<2x2x512xf32, #tpu.memory_space<vmem>>, vector<1x2x256xf32>
    %363 = vector.shape_cast %362 : vector<1x2x256xf32> to vector<2x256xf32>
    %364 = vector.broadcast %361 : f32 to vector<2x256xf32>
    %365 = arith.mulf %363, %364 : vector<2x256xf32>
    %366 = arith.addf %324, %365 : vector<2x256xf32>
    %c52 = arith.constant 52 : index
    %367 = memref.load %arg1[%c52] : memref<98xf32, #tpu.memory_space<smem>>
    %c1_153 = arith.constant 1 : index
    %c0_154 = arith.constant 0 : index
    %c80_155 = arith.constant 80 : index
    %368 = vector.load %arg5[%c1_153, %c0_154, %c80_155] : memref<2x2x512xf32, #tpu.memory_space<vmem>>, vector<1x2x256xf32>
    %369 = vector.shape_cast %368 : vector<1x2x256xf32> to vector<2x256xf32>
    %370 = vector.broadcast %367 : f32 to vector<2x256xf32>
    %371 = arith.mulf %369, %370 : vector<2x256xf32>
    %372 = arith.addf %330, %371 : vector<2x256xf32>
    %c53 = arith.constant 53 : index
    %373 = memref.load %arg1[%c53] : memref<98xf32, #tpu.memory_space<smem>>
    %c1_156 = arith.constant 1 : index
    %c0_157 = arith.constant 0 : index
    %c81_158 = arith.constant 81 : index
    %374 = vector.load %arg5[%c1_156, %c0_157, %c81_158] : memref<2x2x512xf32, #tpu.memory_space<vmem>>, vector<1x2x256xf32>
    %375 = vector.shape_cast %374 : vector<1x2x256xf32> to vector<2x256xf32>
    %376 = vector.broadcast %373 : f32 to vector<2x256xf32>
    %377 = arith.mulf %375, %376 : vector<2x256xf32>
    %378 = arith.addf %336, %377 : vector<2x256xf32>
    %c54 = arith.constant 54 : index
    %379 = memref.load %arg1[%c54] : memref<98xf32, #tpu.memory_space<smem>>
    %c1_159 = arith.constant 1 : index
    %c0_160 = arith.constant 0 : index
    %c82_161 = arith.constant 82 : index
    %380 = vector.load %arg5[%c1_159, %c0_160, %c82_161] : memref<2x2x512xf32, #tpu.memory_space<vmem>>, vector<1x2x256xf32>
    %381 = vector.shape_cast %380 : vector<1x2x256xf32> to vector<2x256xf32>
    %382 = vector.broadcast %379 : f32 to vector<2x256xf32>
    %383 = arith.mulf %381, %382 : vector<2x256xf32>
    %384 = arith.addf %342, %383 : vector<2x256xf32>
    %c55 = arith.constant 55 : index
    %385 = memref.load %arg1[%c55] : memref<98xf32, #tpu.memory_space<smem>>
    %c1_162 = arith.constant 1 : index
    %c0_163 = arith.constant 0 : index
    %c83_164 = arith.constant 83 : index
    %386 = vector.load %arg5[%c1_162, %c0_163, %c83_164] : memref<2x2x512xf32, #tpu.memory_space<vmem>>, vector<1x2x256xf32>
    %387 = vector.shape_cast %386 : vector<1x2x256xf32> to vector<2x256xf32>
    %388 = vector.broadcast %385 : f32 to vector<2x256xf32>
    %389 = arith.mulf %387, %388 : vector<2x256xf32>
    %390 = arith.addf %348, %389 : vector<2x256xf32>
    %c56 = arith.constant 56 : index
    %391 = memref.load %arg1[%c56] : memref<98xf32, #tpu.memory_space<smem>>
    %c1_165 = arith.constant 1 : index
    %c0_166 = arith.constant 0 : index
    %c93_167 = arith.constant 93 : index
    %392 = vector.load %arg5[%c1_165, %c0_166, %c93_167] : memref<2x2x512xf32, #tpu.memory_space<vmem>>, vector<1x2x256xf32>
    %393 = vector.shape_cast %392 : vector<1x2x256xf32> to vector<2x256xf32>
    %394 = vector.broadcast %391 : f32 to vector<2x256xf32>
    %395 = arith.mulf %393, %394 : vector<2x256xf32>
    %396 = arith.addf %354, %395 : vector<2x256xf32>
    %c57 = arith.constant 57 : index
    %397 = memref.load %arg1[%c57] : memref<98xf32, #tpu.memory_space<smem>>
    %c1_168 = arith.constant 1 : index
    %c0_169 = arith.constant 0 : index
    %c94_170 = arith.constant 94 : index
    %398 = vector.load %arg5[%c1_168, %c0_169, %c94_170] : memref<2x2x512xf32, #tpu.memory_space<vmem>>, vector<1x2x256xf32>
    %399 = vector.shape_cast %398 : vector<1x2x256xf32> to vector<2x256xf32>
    %400 = vector.broadcast %397 : f32 to vector<2x256xf32>
    %401 = arith.mulf %399, %400 : vector<2x256xf32>
    %402 = arith.addf %360, %401 : vector<2x256xf32>
    %c58 = arith.constant 58 : index
    %403 = memref.load %arg1[%c58] : memref<98xf32, #tpu.memory_space<smem>>
    %c1_171 = arith.constant 1 : index
    %c0_172 = arith.constant 0 : index
    %c95_173 = arith.constant 95 : index
    %404 = vector.load %arg5[%c1_171, %c0_172, %c95_173] : memref<2x2x512xf32, #tpu.memory_space<vmem>>, vector<1x2x256xf32>
    %405 = vector.shape_cast %404 : vector<1x2x256xf32> to vector<2x256xf32>
    %406 = vector.broadcast %403 : f32 to vector<2x256xf32>
    %407 = arith.mulf %405, %406 : vector<2x256xf32>
    %408 = arith.addf %366, %407 : vector<2x256xf32>
    %c59 = arith.constant 59 : index
    %409 = memref.load %arg1[%c59] : memref<98xf32, #tpu.memory_space<smem>>
    %c1_174 = arith.constant 1 : index
    %c0_175 = arith.constant 0 : index
    %c96_176 = arith.constant 96 : index
    %410 = vector.load %arg5[%c1_174, %c0_175, %c96_176] : memref<2x2x512xf32, #tpu.memory_space<vmem>>, vector<1x2x256xf32>
    %411 = vector.shape_cast %410 : vector<1x2x256xf32> to vector<2x256xf32>
    %412 = vector.broadcast %409 : f32 to vector<2x256xf32>
    %413 = arith.mulf %411, %412 : vector<2x256xf32>
    %414 = arith.addf %372, %413 : vector<2x256xf32>
    %c60 = arith.constant 60 : index
    %415 = memref.load %arg1[%c60] : memref<98xf32, #tpu.memory_space<smem>>
    %c1_177 = arith.constant 1 : index
    %c0_178 = arith.constant 0 : index
    %c97_179 = arith.constant 97 : index
    %416 = vector.load %arg5[%c1_177, %c0_178, %c97_179] : memref<2x2x512xf32, #tpu.memory_space<vmem>>, vector<1x2x256xf32>
    %417 = vector.shape_cast %416 : vector<1x2x256xf32> to vector<2x256xf32>
    %418 = vector.broadcast %415 : f32 to vector<2x256xf32>
    %419 = arith.mulf %417, %418 : vector<2x256xf32>
    %420 = arith.addf %378, %419 : vector<2x256xf32>
    %c61 = arith.constant 61 : index
    %421 = memref.load %arg1[%c61] : memref<98xf32, #tpu.memory_space<smem>>
    %c1_180 = arith.constant 1 : index
    %c0_181 = arith.constant 0 : index
    %c98_182 = arith.constant 98 : index
    %422 = vector.load %arg5[%c1_180, %c0_181, %c98_182] : memref<2x2x512xf32, #tpu.memory_space<vmem>>, vector<1x2x256xf32>
    %423 = vector.shape_cast %422 : vector<1x2x256xf32> to vector<2x256xf32>
    %424 = vector.broadcast %421 : f32 to vector<2x256xf32>
    %425 = arith.mulf %423, %424 : vector<2x256xf32>
    %426 = arith.addf %384, %425 : vector<2x256xf32>
    %c62 = arith.constant 62 : index
    %427 = memref.load %arg1[%c62] : memref<98xf32, #tpu.memory_space<smem>>
    %c1_183 = arith.constant 1 : index
    %c0_184 = arith.constant 0 : index
    %c99_185 = arith.constant 99 : index
    %428 = vector.load %arg5[%c1_183, %c0_184, %c99_185] : memref<2x2x512xf32, #tpu.memory_space<vmem>>, vector<1x2x256xf32>
    %429 = vector.shape_cast %428 : vector<1x2x256xf32> to vector<2x256xf32>
    %430 = vector.broadcast %427 : f32 to vector<2x256xf32>
    %431 = arith.mulf %429, %430 : vector<2x256xf32>
    %432 = arith.addf %390, %431 : vector<2x256xf32>
    %c63 = arith.constant 63 : index
    %433 = memref.load %arg1[%c63] : memref<98xf32, #tpu.memory_space<smem>>
    %c1_186 = arith.constant 1 : index
    %c0_187 = arith.constant 0 : index
    %c109_188 = arith.constant 109 : index
    %434 = vector.load %arg5[%c1_186, %c0_187, %c109_188] : memref<2x2x512xf32, #tpu.memory_space<vmem>>, vector<1x2x256xf32>
    %435 = vector.shape_cast %434 : vector<1x2x256xf32> to vector<2x256xf32>
    %436 = vector.broadcast %433 : f32 to vector<2x256xf32>
    %437 = arith.mulf %435, %436 : vector<2x256xf32>
    %438 = arith.addf %396, %437 : vector<2x256xf32>
    %c64 = arith.constant 64 : index
    %439 = memref.load %arg1[%c64] : memref<98xf32, #tpu.memory_space<smem>>
    %c1_189 = arith.constant 1 : index
    %c0_190 = arith.constant 0 : index
    %c110_191 = arith.constant 110 : index
    %440 = vector.load %arg5[%c1_189, %c0_190, %c110_191] : memref<2x2x512xf32, #tpu.memory_space<vmem>>, vector<1x2x256xf32>
    %441 = vector.shape_cast %440 : vector<1x2x256xf32> to vector<2x256xf32>
    %442 = vector.broadcast %439 : f32 to vector<2x256xf32>
    %443 = arith.mulf %441, %442 : vector<2x256xf32>
    %444 = arith.addf %402, %443 : vector<2x256xf32>
    %c65 = arith.constant 65 : index
    %445 = memref.load %arg1[%c65] : memref<98xf32, #tpu.memory_space<smem>>
    %c1_192 = arith.constant 1 : index
    %c0_193 = arith.constant 0 : index
    %c111_194 = arith.constant 111 : index
    %446 = vector.load %arg5[%c1_192, %c0_193, %c111_194] : memref<2x2x512xf32, #tpu.memory_space<vmem>>, vector<1x2x256xf32>
    %447 = vector.shape_cast %446 : vector<1x2x256xf32> to vector<2x256xf32>
    %448 = vector.broadcast %445 : f32 to vector<2x256xf32>
    %449 = arith.mulf %447, %448 : vector<2x256xf32>
    %450 = arith.addf %408, %449 : vector<2x256xf32>
    %c66 = arith.constant 66 : index
    %451 = memref.load %arg1[%c66] : memref<98xf32, #tpu.memory_space<smem>>
    %c1_195 = arith.constant 1 : index
    %c0_196 = arith.constant 0 : index
    %c112_197 = arith.constant 112 : index
    %452 = vector.load %arg5[%c1_195, %c0_196, %c112_197] : memref<2x2x512xf32, #tpu.memory_space<vmem>>, vector<1x2x256xf32>
    %453 = vector.shape_cast %452 : vector<1x2x256xf32> to vector<2x256xf32>
    %454 = vector.broadcast %451 : f32 to vector<2x256xf32>
    %455 = arith.mulf %453, %454 : vector<2x256xf32>
    %456 = arith.addf %414, %455 : vector<2x256xf32>
    %c67 = arith.constant 67 : index
    %457 = memref.load %arg1[%c67] : memref<98xf32, #tpu.memory_space<smem>>
    %c1_198 = arith.constant 1 : index
    %c0_199 = arith.constant 0 : index
    %c113_200 = arith.constant 113 : index
    %458 = vector.load %arg5[%c1_198, %c0_199, %c113_200] : memref<2x2x512xf32, #tpu.memory_space<vmem>>, vector<1x2x256xf32>
    %459 = vector.shape_cast %458 : vector<1x2x256xf32> to vector<2x256xf32>
    %460 = vector.broadcast %457 : f32 to vector<2x256xf32>
    %461 = arith.mulf %459, %460 : vector<2x256xf32>
    %462 = arith.addf %420, %461 : vector<2x256xf32>
    %c68 = arith.constant 68 : index
    %463 = memref.load %arg1[%c68] : memref<98xf32, #tpu.memory_space<smem>>
    %c1_201 = arith.constant 1 : index
    %c0_202 = arith.constant 0 : index
    %c114_203 = arith.constant 114 : index
    %464 = vector.load %arg5[%c1_201, %c0_202, %c114_203] : memref<2x2x512xf32, #tpu.memory_space<vmem>>, vector<1x2x256xf32>
    %465 = vector.shape_cast %464 : vector<1x2x256xf32> to vector<2x256xf32>
    %466 = vector.broadcast %463 : f32 to vector<2x256xf32>
    %467 = arith.mulf %465, %466 : vector<2x256xf32>
    %468 = arith.addf %426, %467 : vector<2x256xf32>
    %c69 = arith.constant 69 : index
    %469 = memref.load %arg1[%c69] : memref<98xf32, #tpu.memory_space<smem>>
    %c1_204 = arith.constant 1 : index
    %c0_205 = arith.constant 0 : index
    %c115_206 = arith.constant 115 : index
    %470 = vector.load %arg5[%c1_204, %c0_205, %c115_206] : memref<2x2x512xf32, #tpu.memory_space<vmem>>, vector<1x2x256xf32>
    %471 = vector.shape_cast %470 : vector<1x2x256xf32> to vector<2x256xf32>
    %472 = vector.broadcast %469 : f32 to vector<2x256xf32>
    %473 = arith.mulf %471, %472 : vector<2x256xf32>
    %474 = arith.addf %432, %473 : vector<2x256xf32>
    %c70 = arith.constant 70 : index
    %475 = memref.load %arg1[%c70] : memref<98xf32, #tpu.memory_space<smem>>
    %c1_207 = arith.constant 1 : index
    %c0_208 = arith.constant 0 : index
    %c125_209 = arith.constant 125 : index
    %476 = vector.load %arg5[%c1_207, %c0_208, %c125_209] : memref<2x2x512xf32, #tpu.memory_space<vmem>>, vector<1x2x256xf32>
    %477 = vector.shape_cast %476 : vector<1x2x256xf32> to vector<2x256xf32>
    %478 = vector.broadcast %475 : f32 to vector<2x256xf32>
    %479 = arith.mulf %477, %478 : vector<2x256xf32>
    %480 = arith.addf %438, %479 : vector<2x256xf32>
    %c71 = arith.constant 71 : index
    %481 = memref.load %arg1[%c71] : memref<98xf32, #tpu.memory_space<smem>>
    %c1_210 = arith.constant 1 : index
    %c0_211 = arith.constant 0 : index
    %c126_212 = arith.constant 126 : index
    %482 = vector.load %arg5[%c1_210, %c0_211, %c126_212] : memref<2x2x512xf32, #tpu.memory_space<vmem>>, vector<1x2x256xf32>
    %483 = vector.shape_cast %482 : vector<1x2x256xf32> to vector<2x256xf32>
    %484 = vector.broadcast %481 : f32 to vector<2x256xf32>
    %485 = arith.mulf %483, %484 : vector<2x256xf32>
    %486 = arith.addf %444, %485 : vector<2x256xf32>
    %c72 = arith.constant 72 : index
    %487 = memref.load %arg1[%c72] : memref<98xf32, #tpu.memory_space<smem>>
    %c1_213 = arith.constant 1 : index
    %c0_214 = arith.constant 0 : index
    %c127_215 = arith.constant 127 : index
    %488 = vector.load %arg5[%c1_213, %c0_214, %c127_215] : memref<2x2x512xf32, #tpu.memory_space<vmem>>, vector<1x2x256xf32>
    %489 = vector.shape_cast %488 : vector<1x2x256xf32> to vector<2x256xf32>
    %490 = vector.broadcast %487 : f32 to vector<2x256xf32>
    %491 = arith.mulf %489, %490 : vector<2x256xf32>
    %492 = arith.addf %450, %491 : vector<2x256xf32>
    %c73 = arith.constant 73 : index
    %493 = memref.load %arg1[%c73] : memref<98xf32, #tpu.memory_space<smem>>
    %c1_216 = arith.constant 1 : index
    %c0_217 = arith.constant 0 : index
    %c128_218 = arith.constant 128 : index
    %494 = vector.load %arg5[%c1_216, %c0_217, %c128_218] : memref<2x2x512xf32, #tpu.memory_space<vmem>>, vector<1x2x256xf32>
    %495 = vector.shape_cast %494 : vector<1x2x256xf32> to vector<2x256xf32>
    %496 = vector.broadcast %493 : f32 to vector<2x256xf32>
    %497 = arith.mulf %495, %496 : vector<2x256xf32>
    %498 = arith.addf %456, %497 : vector<2x256xf32>
    %c74 = arith.constant 74 : index
    %499 = memref.load %arg1[%c74] : memref<98xf32, #tpu.memory_space<smem>>
    %c1_219 = arith.constant 1 : index
    %c0_220 = arith.constant 0 : index
    %c129_221 = arith.constant 129 : index
    %500 = vector.load %arg5[%c1_219, %c0_220, %c129_221] : memref<2x2x512xf32, #tpu.memory_space<vmem>>, vector<1x2x256xf32>
    %501 = vector.shape_cast %500 : vector<1x2x256xf32> to vector<2x256xf32>
    %502 = vector.broadcast %499 : f32 to vector<2x256xf32>
    %503 = arith.mulf %501, %502 : vector<2x256xf32>
    %504 = arith.addf %462, %503 : vector<2x256xf32>
    %c75 = arith.constant 75 : index
    %505 = memref.load %arg1[%c75] : memref<98xf32, #tpu.memory_space<smem>>
    %c1_222 = arith.constant 1 : index
    %c0_223 = arith.constant 0 : index
    %c130_224 = arith.constant 130 : index
    %506 = vector.load %arg5[%c1_222, %c0_223, %c130_224] : memref<2x2x512xf32, #tpu.memory_space<vmem>>, vector<1x2x256xf32>
    %507 = vector.shape_cast %506 : vector<1x2x256xf32> to vector<2x256xf32>
    %508 = vector.broadcast %505 : f32 to vector<2x256xf32>
    %509 = arith.mulf %507, %508 : vector<2x256xf32>
    %510 = arith.addf %468, %509 : vector<2x256xf32>
    %c76 = arith.constant 76 : index
    %511 = memref.load %arg1[%c76] : memref<98xf32, #tpu.memory_space<smem>>
    %c1_225 = arith.constant 1 : index
    %c0_226 = arith.constant 0 : index
    %c131_227 = arith.constant 131 : index
    %512 = vector.load %arg5[%c1_225, %c0_226, %c131_227] : memref<2x2x512xf32, #tpu.memory_space<vmem>>, vector<1x2x256xf32>
    %513 = vector.shape_cast %512 : vector<1x2x256xf32> to vector<2x256xf32>
    %514 = vector.broadcast %511 : f32 to vector<2x256xf32>
    %515 = arith.mulf %513, %514 : vector<2x256xf32>
    %516 = arith.addf %474, %515 : vector<2x256xf32>
    %c77_228 = arith.constant 77 : index
    %517 = memref.load %arg1[%c77_228] : memref<98xf32, #tpu.memory_space<smem>>
    %c1_229 = arith.constant 1 : index
    %c0_230 = arith.constant 0 : index
    %c141_231 = arith.constant 141 : index
    %518 = vector.load %arg5[%c1_229, %c0_230, %c141_231] : memref<2x2x512xf32, #tpu.memory_space<vmem>>, vector<1x2x256xf32>
    %519 = vector.shape_cast %518 : vector<1x2x256xf32> to vector<2x256xf32>
    %520 = vector.broadcast %517 : f32 to vector<2x256xf32>
    %521 = arith.mulf %519, %520 : vector<2x256xf32>
    %522 = arith.addf %480, %521 : vector<2x256xf32>
    %c78_232 = arith.constant 78 : index
    %523 = memref.load %arg1[%c78_232] : memref<98xf32, #tpu.memory_space<smem>>
    %c1_233 = arith.constant 1 : index
    %c0_234 = arith.constant 0 : index
    %c142_235 = arith.constant 142 : index
    %524 = vector.load %arg5[%c1_233, %c0_234, %c142_235] : memref<2x2x512xf32, #tpu.memory_space<vmem>>, vector<1x2x256xf32>
    %525 = vector.shape_cast %524 : vector<1x2x256xf32> to vector<2x256xf32>
    %526 = vector.broadcast %523 : f32 to vector<2x256xf32>
    %527 = arith.mulf %525, %526 : vector<2x256xf32>
    %528 = arith.addf %486, %527 : vector<2x256xf32>
    %c79_236 = arith.constant 79 : index
    %529 = memref.load %arg1[%c79_236] : memref<98xf32, #tpu.memory_space<smem>>
    %c1_237 = arith.constant 1 : index
    %c0_238 = arith.constant 0 : index
    %c143_239 = arith.constant 143 : index
    %530 = vector.load %arg5[%c1_237, %c0_238, %c143_239] : memref<2x2x512xf32, #tpu.memory_space<vmem>>, vector<1x2x256xf32>
    %531 = vector.shape_cast %530 : vector<1x2x256xf32> to vector<2x256xf32>
    %532 = vector.broadcast %529 : f32 to vector<2x256xf32>
    %533 = arith.mulf %531, %532 : vector<2x256xf32>
    %534 = arith.addf %492, %533 : vector<2x256xf32>
    %c80_240 = arith.constant 80 : index
    %535 = memref.load %arg1[%c80_240] : memref<98xf32, #tpu.memory_space<smem>>
    %c1_241 = arith.constant 1 : index
    %c0_242 = arith.constant 0 : index
    %c144_243 = arith.constant 144 : index
    %536 = vector.load %arg5[%c1_241, %c0_242, %c144_243] : memref<2x2x512xf32, #tpu.memory_space<vmem>>, vector<1x2x256xf32>
    %537 = vector.shape_cast %536 : vector<1x2x256xf32> to vector<2x256xf32>
    %538 = vector.broadcast %535 : f32 to vector<2x256xf32>
    %539 = arith.mulf %537, %538 : vector<2x256xf32>
    %540 = arith.addf %498, %539 : vector<2x256xf32>
    %c81_244 = arith.constant 81 : index
    %541 = memref.load %arg1[%c81_244] : memref<98xf32, #tpu.memory_space<smem>>
    %c1_245 = arith.constant 1 : index
    %c0_246 = arith.constant 0 : index
    %c145_247 = arith.constant 145 : index
    %542 = vector.load %arg5[%c1_245, %c0_246, %c145_247] : memref<2x2x512xf32, #tpu.memory_space<vmem>>, vector<1x2x256xf32>
    %543 = vector.shape_cast %542 : vector<1x2x256xf32> to vector<2x256xf32>
    %544 = vector.broadcast %541 : f32 to vector<2x256xf32>
    %545 = arith.mulf %543, %544 : vector<2x256xf32>
    %546 = arith.addf %504, %545 : vector<2x256xf32>
    %c82_248 = arith.constant 82 : index
    %547 = memref.load %arg1[%c82_248] : memref<98xf32, #tpu.memory_space<smem>>
    %c1_249 = arith.constant 1 : index
    %c0_250 = arith.constant 0 : index
    %c146_251 = arith.constant 146 : index
    %548 = vector.load %arg5[%c1_249, %c0_250, %c146_251] : memref<2x2x512xf32, #tpu.memory_space<vmem>>, vector<1x2x256xf32>
    %549 = vector.shape_cast %548 : vector<1x2x256xf32> to vector<2x256xf32>
    %550 = vector.broadcast %547 : f32 to vector<2x256xf32>
    %551 = arith.mulf %549, %550 : vector<2x256xf32>
    %552 = arith.addf %510, %551 : vector<2x256xf32>
    %c83_252 = arith.constant 83 : index
    %553 = memref.load %arg1[%c83_252] : memref<98xf32, #tpu.memory_space<smem>>
    %c1_253 = arith.constant 1 : index
    %c0_254 = arith.constant 0 : index
    %c147_255 = arith.constant 147 : index
    %554 = vector.load %arg5[%c1_253, %c0_254, %c147_255] : memref<2x2x512xf32, #tpu.memory_space<vmem>>, vector<1x2x256xf32>
    %555 = vector.shape_cast %554 : vector<1x2x256xf32> to vector<2x256xf32>
    %556 = vector.broadcast %553 : f32 to vector<2x256xf32>
    %557 = arith.mulf %555, %556 : vector<2x256xf32>
    %558 = arith.addf %516, %557 : vector<2x256xf32>
    %c84 = arith.constant 84 : index
    %559 = memref.load %arg1[%c84] : memref<98xf32, #tpu.memory_space<smem>>
    %c1_256 = arith.constant 1 : index
    %c0_257 = arith.constant 0 : index
    %c157_258 = arith.constant 157 : index
    %560 = vector.load %arg5[%c1_256, %c0_257, %c157_258] : memref<2x2x512xf32, #tpu.memory_space<vmem>>, vector<1x2x256xf32>
    %561 = vector.shape_cast %560 : vector<1x2x256xf32> to vector<2x256xf32>
    %562 = vector.broadcast %559 : f32 to vector<2x256xf32>
    %563 = arith.mulf %561, %562 : vector<2x256xf32>
    %564 = arith.addf %522, %563 : vector<2x256xf32>
    %c85 = arith.constant 85 : index
    %565 = memref.load %arg1[%c85] : memref<98xf32, #tpu.memory_space<smem>>
    %c1_259 = arith.constant 1 : index
    %c0_260 = arith.constant 0 : index
    %c158_261 = arith.constant 158 : index
    %566 = vector.load %arg5[%c1_259, %c0_260, %c158_261] : memref<2x2x512xf32, #tpu.memory_space<vmem>>, vector<1x2x256xf32>
    %567 = vector.shape_cast %566 : vector<1x2x256xf32> to vector<2x256xf32>
    %568 = vector.broadcast %565 : f32 to vector<2x256xf32>
    %569 = arith.mulf %567, %568 : vector<2x256xf32>
    %570 = arith.addf %528, %569 : vector<2x256xf32>
    %c86 = arith.constant 86 : index
    %571 = memref.load %arg1[%c86] : memref<98xf32, #tpu.memory_space<smem>>
    %c1_262 = arith.constant 1 : index
    %c0_263 = arith.constant 0 : index
    %c159_264 = arith.constant 159 : index
    %572 = vector.load %arg5[%c1_262, %c0_263, %c159_264] : memref<2x2x512xf32, #tpu.memory_space<vmem>>, vector<1x2x256xf32>
    %573 = vector.shape_cast %572 : vector<1x2x256xf32> to vector<2x256xf32>
    %574 = vector.broadcast %571 : f32 to vector<2x256xf32>
    %575 = arith.mulf %573, %574 : vector<2x256xf32>
    %576 = arith.addf %534, %575 : vector<2x256xf32>
    %c87 = arith.constant 87 : index
    %577 = memref.load %arg1[%c87] : memref<98xf32, #tpu.memory_space<smem>>
    %c1_265 = arith.constant 1 : index
    %c0_266 = arith.constant 0 : index
    %c160_267 = arith.constant 160 : index
    %578 = vector.load %arg5[%c1_265, %c0_266, %c160_267] : memref<2x2x512xf32, #tpu.memory_space<vmem>>, vector<1x2x256xf32>
    %579 = vector.shape_cast %578 : vector<1x2x256xf32> to vector<2x256xf32>
    %580 = vector.broadcast %577 : f32 to vector<2x256xf32>
    %581 = arith.mulf %579, %580 : vector<2x256xf32>
    %582 = arith.addf %540, %581 : vector<2x256xf32>
    %c88 = arith.constant 88 : index
    %583 = memref.load %arg1[%c88] : memref<98xf32, #tpu.memory_space<smem>>
    %c1_268 = arith.constant 1 : index
    %c0_269 = arith.constant 0 : index
    %c161_270 = arith.constant 161 : index
    %584 = vector.load %arg5[%c1_268, %c0_269, %c161_270] : memref<2x2x512xf32, #tpu.memory_space<vmem>>, vector<1x2x256xf32>
    %585 = vector.shape_cast %584 : vector<1x2x256xf32> to vector<2x256xf32>
    %586 = vector.broadcast %583 : f32 to vector<2x256xf32>
    %587 = arith.mulf %585, %586 : vector<2x256xf32>
    %588 = arith.addf %546, %587 : vector<2x256xf32>
    %c89 = arith.constant 89 : index
    %589 = memref.load %arg1[%c89] : memref<98xf32, #tpu.memory_space<smem>>
    %c1_271 = arith.constant 1 : index
    %c0_272 = arith.constant 0 : index
    %c162_273 = arith.constant 162 : index
    %590 = vector.load %arg5[%c1_271, %c0_272, %c162_273] : memref<2x2x512xf32, #tpu.memory_space<vmem>>, vector<1x2x256xf32>
    %591 = vector.shape_cast %590 : vector<1x2x256xf32> to vector<2x256xf32>
    %592 = vector.broadcast %589 : f32 to vector<2x256xf32>
    %593 = arith.mulf %591, %592 : vector<2x256xf32>
    %594 = arith.addf %552, %593 : vector<2x256xf32>
    %c90 = arith.constant 90 : index
    %595 = memref.load %arg1[%c90] : memref<98xf32, #tpu.memory_space<smem>>
    %c1_274 = arith.constant 1 : index
    %c0_275 = arith.constant 0 : index
    %c163_276 = arith.constant 163 : index
    %596 = vector.load %arg5[%c1_274, %c0_275, %c163_276] : memref<2x2x512xf32, #tpu.memory_space<vmem>>, vector<1x2x256xf32>
    %597 = vector.shape_cast %596 : vector<1x2x256xf32> to vector<2x256xf32>
    %598 = vector.broadcast %595 : f32 to vector<2x256xf32>
    %599 = arith.mulf %597, %598 : vector<2x256xf32>
    %600 = arith.addf %558, %599 : vector<2x256xf32>
    %c91 = arith.constant 91 : index
    %601 = memref.load %arg1[%c91] : memref<98xf32, #tpu.memory_space<smem>>
    %c1_277 = arith.constant 1 : index
    %c0_278 = arith.constant 0 : index
    %c173_279 = arith.constant 173 : index
    %602 = vector.load %arg5[%c1_277, %c0_278, %c173_279] : memref<2x2x512xf32, #tpu.memory_space<vmem>>, vector<1x2x256xf32>
    %603 = vector.shape_cast %602 : vector<1x2x256xf32> to vector<2x256xf32>
    %604 = vector.broadcast %601 : f32 to vector<2x256xf32>
    %605 = arith.mulf %603, %604 : vector<2x256xf32>
    %606 = arith.addf %564, %605 : vector<2x256xf32>
    %c92 = arith.constant 92 : index
    %607 = memref.load %arg1[%c92] : memref<98xf32, #tpu.memory_space<smem>>
    %c1_280 = arith.constant 1 : index
    %c0_281 = arith.constant 0 : index
    %c174_282 = arith.constant 174 : index
    %608 = vector.load %arg5[%c1_280, %c0_281, %c174_282] : memref<2x2x512xf32, #tpu.memory_space<vmem>>, vector<1x2x256xf32>
    %609 = vector.shape_cast %608 : vector<1x2x256xf32> to vector<2x256xf32>
    %610 = vector.broadcast %607 : f32 to vector<2x256xf32>
    %611 = arith.mulf %609, %610 : vector<2x256xf32>
    %612 = arith.addf %570, %611 : vector<2x256xf32>
    %c93_283 = arith.constant 93 : index
    %613 = memref.load %arg1[%c93_283] : memref<98xf32, #tpu.memory_space<smem>>
    %c1_284 = arith.constant 1 : index
    %c0_285 = arith.constant 0 : index
    %c175_286 = arith.constant 175 : index
    %614 = vector.load %arg5[%c1_284, %c0_285, %c175_286] : memref<2x2x512xf32, #tpu.memory_space<vmem>>, vector<1x2x256xf32>
    %615 = vector.shape_cast %614 : vector<1x2x256xf32> to vector<2x256xf32>
    %616 = vector.broadcast %613 : f32 to vector<2x256xf32>
    %617 = arith.mulf %615, %616 : vector<2x256xf32>
    %618 = arith.addf %576, %617 : vector<2x256xf32>
    %c94_287 = arith.constant 94 : index
    %619 = memref.load %arg1[%c94_287] : memref<98xf32, #tpu.memory_space<smem>>
    %c1_288 = arith.constant 1 : index
    %c0_289 = arith.constant 0 : index
    %c176_290 = arith.constant 176 : index
    %620 = vector.load %arg5[%c1_288, %c0_289, %c176_290] : memref<2x2x512xf32, #tpu.memory_space<vmem>>, vector<1x2x256xf32>
    %621 = vector.shape_cast %620 : vector<1x2x256xf32> to vector<2x256xf32>
    %622 = vector.broadcast %619 : f32 to vector<2x256xf32>
    %623 = arith.mulf %621, %622 : vector<2x256xf32>
    %624 = arith.addf %582, %623 : vector<2x256xf32>
    %c95_291 = arith.constant 95 : index
    %625 = memref.load %arg1[%c95_291] : memref<98xf32, #tpu.memory_space<smem>>
    %c1_292 = arith.constant 1 : index
    %c0_293 = arith.constant 0 : index
    %c177_294 = arith.constant 177 : index
    %626 = vector.load %arg5[%c1_292, %c0_293, %c177_294] : memref<2x2x512xf32, #tpu.memory_space<vmem>>, vector<1x2x256xf32>
    %627 = vector.shape_cast %626 : vector<1x2x256xf32> to vector<2x256xf32>
    %628 = vector.broadcast %625 : f32 to vector<2x256xf32>
    %629 = arith.mulf %627, %628 : vector<2x256xf32>
    %630 = arith.addf %588, %629 : vector<2x256xf32>
    %c96_295 = arith.constant 96 : index
    %631 = memref.load %arg1[%c96_295] : memref<98xf32, #tpu.memory_space<smem>>
    %c1_296 = arith.constant 1 : index
    %c0_297 = arith.constant 0 : index
    %c178_298 = arith.constant 178 : index
    %632 = vector.load %arg5[%c1_296, %c0_297, %c178_298] : memref<2x2x512xf32, #tpu.memory_space<vmem>>, vector<1x2x256xf32>
    %633 = vector.shape_cast %632 : vector<1x2x256xf32> to vector<2x256xf32>
    %634 = vector.broadcast %631 : f32 to vector<2x256xf32>
    %635 = arith.mulf %633, %634 : vector<2x256xf32>
    %636 = arith.addf %594, %635 : vector<2x256xf32>
    %c97_299 = arith.constant 97 : index
    %637 = memref.load %arg1[%c97_299] : memref<98xf32, #tpu.memory_space<smem>>
    %c1_300 = arith.constant 1 : index
    %c0_301 = arith.constant 0 : index
    %c179_302 = arith.constant 179 : index
    %638 = vector.load %arg5[%c1_300, %c0_301, %c179_302] : memref<2x2x512xf32, #tpu.memory_space<vmem>>, vector<1x2x256xf32>
    %639 = vector.shape_cast %638 : vector<1x2x256xf32> to vector<2x256xf32>
    %640 = vector.broadcast %637 : f32 to vector<2x256xf32>
    %641 = arith.mulf %639, %640 : vector<2x256xf32>
    %642 = arith.addf %600, %641 : vector<2x256xf32>
    %643 = tpu.iota {dimensions = array<i32: 1>} : vector<2x256xi32>
    %c16_i32 = arith.constant 16 : i32
    %c0_i32_303 = arith.constant 0 : i32
    %644 = arith.cmpi eq, %c16_i32, %c0_i32_303 : i32
    %c1_i32_304 = arith.constant 1 : i32
    %645 = arith.select %644, %c1_i32_304, %c16_i32 : i32
    %646 = vector.broadcast %645 : i32 to vector<2x256xi32>
    %647 = arith.remsi %643, %646 : vector<2x256xi32>
    %c0_i32_305 = arith.constant 0 : i32
    %648 = vector.broadcast %c0_i32_305 : i32 to vector<2x256xi32>
    %649 = arith.cmpi ne, %647, %648 : vector<2x256xi32>
    %c0_i32_306 = arith.constant 0 : i32
    %650 = vector.broadcast %c0_i32_306 : i32 to vector<2x256xi32>
    %651 = arith.cmpi slt, %647, %650 : vector<2x256xi32>
    %c0_i32_307 = arith.constant 0 : i32
    %652 = arith.cmpi slt, %645, %c0_i32_307 : i32
    %653 = vector.broadcast %652 : i1 to vector<2x256xi1>
    %654 = vector.broadcast %653 : vector<2x256xi1> to vector<2x256xi1>
    %655 = arith.xori %651, %654 : vector<2x256xi1>
    %656 = arith.andi %655, %649 : vector<2x256xi1>
    %657 = vector.broadcast %645 : i32 to vector<2x256xi32>
    %658 = arith.addi %647, %657 : vector<2x256xi32>
    %659 = arith.select %656, %658, %647 : vector<2x256xi1>, vector<2x256xi32>
    %c0_308 = arith.constant 0 : index
    %660 = memref.load %arg2[%c0_308] : memref<1xf32, #tpu.memory_space<smem>>
    %661 = vector.broadcast %660 : f32 to vector<2x256xf32>
    %c-3_i32 = arith.constant -3 : i32
    %662 = vector.broadcast %c-3_i32 : i32 to vector<2x256xi32>
    %663 = arith.addi %659, %662 : vector<2x256xi32>
    %c0_i32_309 = arith.constant 0 : i32
    %664 = vector.broadcast %c0_i32_309 : i32 to vector<2x256xi32>
    %665 = arith.cmpi sge, %663, %664 : vector<2x256xi32>
    %c-3_i32_310 = arith.constant -3 : i32
    %666 = vector.broadcast %c-3_i32_310 : i32 to vector<2x256xi32>
    %667 = arith.addi %659, %666 : vector<2x256xi32>
    %c16_i32_311 = arith.constant 16 : i32
    %668 = vector.broadcast %c16_i32_311 : i32 to vector<2x256xi32>
    %669 = arith.cmpi slt, %667, %668 : vector<2x256xi32>
    %670 = arith.andi %665, %669 : vector<2x256xi1>
    %cst_312 = arith.constant 0.000000e+00 : f32
    %671 = vector.broadcast %cst_312 : f32 to vector<2x256xf32>
    %672 = arith.select %670, %606, %671 : vector<2x256xi1>, vector<2x256xf32>
    %673 = arith.addf %661, %672 : vector<2x256xf32>
    %c-2_i32 = arith.constant -2 : i32
    %674 = vector.broadcast %c-2_i32 : i32 to vector<2x256xi32>
    %675 = arith.addi %659, %674 : vector<2x256xi32>
    %c0_i32_313 = arith.constant 0 : i32
    %676 = vector.broadcast %c0_i32_313 : i32 to vector<2x256xi32>
    %677 = arith.cmpi sge, %675, %676 : vector<2x256xi32>
    %c-2_i32_314 = arith.constant -2 : i32
    %678 = vector.broadcast %c-2_i32_314 : i32 to vector<2x256xi32>
    %679 = arith.addi %659, %678 : vector<2x256xi32>
    %c16_i32_315 = arith.constant 16 : i32
    %680 = vector.broadcast %c16_i32_315 : i32 to vector<2x256xi32>
    %681 = arith.cmpi slt, %679, %680 : vector<2x256xi32>
    %682 = arith.andi %677, %681 : vector<2x256xi1>
    %cst_316 = arith.constant 0.000000e+00 : f32
    %683 = vector.broadcast %cst_316 : f32 to vector<2x256xf32>
    %684 = arith.select %682, %612, %683 : vector<2x256xi1>, vector<2x256xf32>
    %685 = arith.addf %673, %684 : vector<2x256xf32>
    %c-1_i32 = arith.constant -1 : i32
    %686 = vector.broadcast %c-1_i32 : i32 to vector<2x256xi32>
    %687 = arith.addi %659, %686 : vector<2x256xi32>
    %c0_i32_317 = arith.constant 0 : i32
    %688 = vector.broadcast %c0_i32_317 : i32 to vector<2x256xi32>
    %689 = arith.cmpi sge, %687, %688 : vector<2x256xi32>
    %c-1_i32_318 = arith.constant -1 : i32
    %690 = vector.broadcast %c-1_i32_318 : i32 to vector<2x256xi32>
    %691 = arith.addi %659, %690 : vector<2x256xi32>
    %c16_i32_319 = arith.constant 16 : i32
    %692 = vector.broadcast %c16_i32_319 : i32 to vector<2x256xi32>
    %693 = arith.cmpi slt, %691, %692 : vector<2x256xi32>
    %694 = arith.andi %689, %693 : vector<2x256xi1>
    %cst_320 = arith.constant 0.000000e+00 : f32
    %695 = vector.broadcast %cst_320 : f32 to vector<2x256xf32>
    %696 = arith.select %694, %618, %695 : vector<2x256xi1>, vector<2x256xf32>
    %697 = arith.addf %685, %696 : vector<2x256xf32>
    %c0_i32_321 = arith.constant 0 : i32
    %698 = vector.broadcast %c0_i32_321 : i32 to vector<2x256xi32>
    %699 = arith.addi %659, %698 : vector<2x256xi32>
    %c0_i32_322 = arith.constant 0 : i32
    %700 = vector.broadcast %c0_i32_322 : i32 to vector<2x256xi32>
    %701 = arith.cmpi sge, %699, %700 : vector<2x256xi32>
    %c0_i32_323 = arith.constant 0 : i32
    %702 = vector.broadcast %c0_i32_323 : i32 to vector<2x256xi32>
    %703 = arith.addi %659, %702 : vector<2x256xi32>
    %c16_i32_324 = arith.constant 16 : i32
    %704 = vector.broadcast %c16_i32_324 : i32 to vector<2x256xi32>
    %705 = arith.cmpi slt, %703, %704 : vector<2x256xi32>
    %706 = arith.andi %701, %705 : vector<2x256xi1>
    %cst_325 = arith.constant 0.000000e+00 : f32
    %707 = vector.broadcast %cst_325 : f32 to vector<2x256xf32>
    %708 = arith.select %706, %624, %707 : vector<2x256xi1>, vector<2x256xf32>
    %709 = arith.addf %697, %708 : vector<2x256xf32>
    %c1_i32_326 = arith.constant 1 : i32
    %710 = vector.broadcast %c1_i32_326 : i32 to vector<2x256xi32>
    %711 = arith.addi %659, %710 : vector<2x256xi32>
    %c0_i32_327 = arith.constant 0 : i32
    %712 = vector.broadcast %c0_i32_327 : i32 to vector<2x256xi32>
    %713 = arith.cmpi sge, %711, %712 : vector<2x256xi32>
    %c1_i32_328 = arith.constant 1 : i32
    %714 = vector.broadcast %c1_i32_328 : i32 to vector<2x256xi32>
    %715 = arith.addi %659, %714 : vector<2x256xi32>
    %c16_i32_329 = arith.constant 16 : i32
    %716 = vector.broadcast %c16_i32_329 : i32 to vector<2x256xi32>
    %717 = arith.cmpi slt, %715, %716 : vector<2x256xi32>
    %718 = arith.andi %713, %717 : vector<2x256xi1>
    %cst_330 = arith.constant 0.000000e+00 : f32
    %719 = vector.broadcast %cst_330 : f32 to vector<2x256xf32>
    %720 = arith.select %718, %630, %719 : vector<2x256xi1>, vector<2x256xf32>
    %721 = arith.addf %709, %720 : vector<2x256xf32>
    %c2_i32 = arith.constant 2 : i32
    %722 = vector.broadcast %c2_i32 : i32 to vector<2x256xi32>
    %723 = arith.addi %659, %722 : vector<2x256xi32>
    %c0_i32_331 = arith.constant 0 : i32
    %724 = vector.broadcast %c0_i32_331 : i32 to vector<2x256xi32>
    %725 = arith.cmpi sge, %723, %724 : vector<2x256xi32>
    %c2_i32_332 = arith.constant 2 : i32
    %726 = vector.broadcast %c2_i32_332 : i32 to vector<2x256xi32>
    %727 = arith.addi %659, %726 : vector<2x256xi32>
    %c16_i32_333 = arith.constant 16 : i32
    %728 = vector.broadcast %c16_i32_333 : i32 to vector<2x256xi32>
    %729 = arith.cmpi slt, %727, %728 : vector<2x256xi32>
    %730 = arith.andi %725, %729 : vector<2x256xi1>
    %cst_334 = arith.constant 0.000000e+00 : f32
    %731 = vector.broadcast %cst_334 : f32 to vector<2x256xf32>
    %732 = arith.select %730, %636, %731 : vector<2x256xi1>, vector<2x256xf32>
    %733 = arith.addf %721, %732 : vector<2x256xf32>
    %c3_i32 = arith.constant 3 : i32
    %734 = vector.broadcast %c3_i32 : i32 to vector<2x256xi32>
    %735 = arith.addi %659, %734 : vector<2x256xi32>
    %c0_i32_335 = arith.constant 0 : i32
    %736 = vector.broadcast %c0_i32_335 : i32 to vector<2x256xi32>
    %737 = arith.cmpi sge, %735, %736 : vector<2x256xi32>
    %c3_i32_336 = arith.constant 3 : i32
    %738 = vector.broadcast %c3_i32_336 : i32 to vector<2x256xi32>
    %739 = arith.addi %659, %738 : vector<2x256xi32>
    %c16_i32_337 = arith.constant 16 : i32
    %740 = vector.broadcast %c16_i32_337 : i32 to vector<2x256xi32>
    %741 = arith.cmpi slt, %739, %740 : vector<2x256xi32>
    %742 = arith.andi %737, %741 : vector<2x256xi1>
    %cst_338 = arith.constant 0.000000e+00 : f32
    %743 = vector.broadcast %cst_338 : f32 to vector<2x256xf32>
    %744 = arith.select %742, %642, %743 : vector<2x256xi1>, vector<2x256xf32>
    %745 = arith.addf %733, %744 : vector<2x256xf32>
    %746 = arith.negf %745 : vector<2x256xf32>
    %747 = math.exp %746 : vector<2x256xf32>
    %cst_339 = arith.constant 1.000000e+00 : f32
    %748 = vector.broadcast %cst_339 : f32 to vector<2x256xf32>
    %749 = arith.addf %748, %747 : vector<2x256xf32>
    %750 = arith.divf %748, %749 : vector<2x256xf32>
    %751 = vector.extract_strided_slice %750 {offsets = [0, 0], sizes = [1, 256], strides = [1, 1]} : vector<2x256xf32> to vector<1x256xf32>
    %752 = vector.shape_cast %751 : vector<1x256xf32> to vector<1x256xf32>
    %753 = vector.broadcast %752 : vector<1x256xf32> to vector<4x256xf32>
    %c0_i32_340 = arith.constant 0 : i32
    %c0_i32_341 = arith.constant 0 : i32
    %c0_i32_342 = arith.constant 0 : i32
    %c4_i32_343 = arith.constant 4 : i32
    %754 = arith.muli %c0_i32_342, %c4_i32_343 : i32
    %755 = tpu.assume_multiple %754, 4 : i32
    %c0_i32_344 = arith.constant 0 : i32
    %c0_i32_345 = arith.constant 0 : i32
    %756 = tpu.memref_slice %arg3[%c0_i32_340, %c0_i32_344, %c0_i32_345] : memref<2x4x256xf32, #tpu.memory_space<vmem>> -> memref<1x4x256xf32, #tpu.memory_space<vmem>>
    %757 = tpu.memref_squeeze %756 : memref<1x4x256xf32, #tpu.memory_space<vmem>> -> memref<4x256xf32, #tpu.memory_space<vmem>>
    %758 = arith.index_cast %755 : i32 to index
    %c0_346 = arith.constant 0 : index
    %759 = vector.load %757[%758, %c0_346] : memref<4x256xf32, #tpu.memory_space<vmem>>, vector<4x256xf32>
    %760 = arith.mulf %759, %753 : vector<4x256xf32>
    %c0_i32_347 = arith.constant 0 : i32
    %c0_i32_348 = arith.constant 0 : i32
    %761 = tpu.memref_slice %arg4[%c0_i32_341, %c0_i32_347, %c0_i32_348] : memref<2x4x256xf32, #tpu.memory_space<vmem>> -> memref<1x4x256xf32, #tpu.memory_space<vmem>>
    %762 = tpu.memref_squeeze %761 : memref<1x4x256xf32, #tpu.memory_space<vmem>> -> memref<4x256xf32, #tpu.memory_space<vmem>>
    %763 = arith.index_cast %755 : i32 to index
    %c0_349 = arith.constant 0 : index
    %764 = vector.load %762[%763, %c0_349] : memref<4x256xf32, #tpu.memory_space<vmem>>, vector<4x256xf32>
    tpu.vector_store %762[%763, %c0_349], %760 {strides = array<i32>} : memref<4x256xf32, #tpu.memory_space<vmem>>, vector<4x256xf32>,
    %c1_i32_350 = arith.constant 1 : i32
    %765 = vector.extract_strided_slice %750 {offsets = [1, 0], sizes = [1, 256], strides = [1, 1]} : vector<2x256xf32> to vector<1x256xf32>
    %766 = vector.shape_cast %765 : vector<1x256xf32> to vector<1x256xf32>
    %767 = vector.broadcast %766 : vector<1x256xf32> to vector<4x256xf32>
    %c1_i32_351 = arith.constant 1 : i32
    %c1_i32_352 = arith.constant 1 : i32
    %c0_i32_353 = arith.constant 0 : i32
    %c4_i32_354 = arith.constant 4 : i32
    %768 = arith.muli %c0_i32_353, %c4_i32_354 : i32
    %769 = tpu.assume_multiple %768, 4 : i32
    %c0_i32_355 = arith.constant 0 : i32
    %c0_i32_356 = arith.constant 0 : i32
    %770 = tpu.memref_slice %arg3[%c1_i32_351, %c0_i32_355, %c0_i32_356] : memref<2x4x256xf32, #tpu.memory_space<vmem>> -> memref<1x4x256xf32, #tpu.memory_space<vmem>>
    %771 = tpu.memref_squeeze %770 : memref<1x4x256xf32, #tpu.memory_space<vmem>> -> memref<4x256xf32, #tpu.memory_space<vmem>>
    %772 = arith.index_cast %769 : i32 to index
    %c0_357 = arith.constant 0 : index
    %773 = vector.load %771[%772, %c0_357] : memref<4x256xf32, #tpu.memory_space<vmem>>, vector<4x256xf32>
    %774 = arith.mulf %773, %767 : vector<4x256xf32>
    %c0_i32_358 = arith.constant 0 : i32
    %c0_i32_359 = arith.constant 0 : i32
    %775 = tpu.memref_slice %arg4[%c1_i32_352, %c0_i32_358, %c0_i32_359] : memref<2x4x256xf32, #tpu.memory_space<vmem>> -> memref<1x4x256xf32, #tpu.memory_space<vmem>>
    %776 = tpu.memref_squeeze %775 : memref<1x4x256xf32, #tpu.memory_space<vmem>> -> memref<4x256xf32, #tpu.memory_space<vmem>>
    %777 = arith.index_cast %769 : i32 to index
    %c0_360 = arith.constant 0 : index
    %778 = vector.load %776[%777, %c0_360] : memref<4x256xf32, #tpu.memory_space<vmem>>, vector<4x256xf32>
    tpu.vector_store %776[%777, %c0_360], %774 {strides = array<i32>} : memref<4x256xf32, #tpu.memory_space<vmem>>, vector<4x256xf32>,
    %c1_i32_361 = arith.constant 1 : i32
    return
  }
  func.func @transform_0(%arg0: i32) -> i32 {
    %c0_i32 = arith.constant 0 : i32
    %c0_i32_0 = arith.constant 0 : i32
    return %c0_i32 : i32
  }
  func.func @transform_1(%arg0: i32) -> i32 {
    %c0_i32 = arith.constant 0 : i32
    %c0_i32_0 = arith.constant 0 : i32
    return %c0_i32 : i32
  }
  func.func @transform_2(%arg0: i32) -> (i32, i32, i32) {
    %c0_i32 = arith.constant 0 : i32
    %c0_i32_0 = arith.constant 0 : i32
    %c0_i32_1 = arith.constant 0 : i32
    return %arg0, %c0_i32, %c0_i32_0 : i32, i32, i32
  }
  func.func @transform_3(%arg0: i32) -> (i32, i32, i32) {
    %c0_i32 = arith.constant 0 : i32
    %c0_i32_0 = arith.constant 0 : i32
    %c0_i32_1 = arith.constant 0 : i32
    return %arg0, %c0_i32, %c0_i32_0 : i32, i32, i32
  }
}

</mosaic_0001>

<llo_original>
// kernel: tpu_custom_call.1
$region0: #{tpu_custom_call.1}
  #allocation0 [shape = 'u32[]', space=smem, size = 0x4, offset = 0x4, fixed_abs, tag = 'smem constant byte address 0x4 - core index']
  #allocation1 [shape = 'u32[144,128]{1,0:T(1,128)}', space=vmem, size = 0x12000, scoped, tag = 'internal scratch']
  %s0 = inlined_call_operand.hbm [shape: f32[8,128], index: 0, kind: input, shape index: {}]
  %s1 = inlined_call_operand.hbm [shape: f32[8,128], index: 1, kind: output, shape index: {}]
  %s2 = sld [smem:[#allocation0]]
  $region18: #{tpu_custom_call.1} parent=0
    _
  %s4 = ssub.s32 1, %s2
  %s5 = scalar_select 0, %s4, %s2
  $region1: #{tpu_custom_call.1} parent=0
    #allocation2 [shape = 'u8[4096]{0}', space=vmem, size = 0x1000, scoped, tag = 'input window, operand 0, single buffered']
    #allocation3 [shape = 's32[1]{0}', space=sflag, size = 0x4, scoped, tag = 'scoped memory for tpu_custom_call.1']
    #allocation4 [shape = 's32[1]{0}', space=sflag, size = 0x4, scoped, tag = 'scoped memory for tpu_custom_call.1']
    #allocation5 [shape = 'u8[4096]{0}', space=vmem, size = 0x1000, scoped, tag = 'output window, operand 0, single buffered']
    %6 = vsyncpa [#allocation3], 0
    %7 = vsyncpa [#allocation4], 0
    // Predicated region
    $region2: #{tpu_custom_call.1} parent=1 // pred_check
      _
    $region3: #{tpu_custom_call.1} parent=1 // pred_check_branch
      %9 = sbr.rel (0) target = $region5
    $region4: #{tpu_custom_call.1} parent=1 // pred_region
      %s11 = ssub.s32 128, 128
      %12 = vsyncadd [#allocation3], %s11
      %s14 = sshll.u32 [#allocation2], 4
      %s15 = int_to_ptr.vmem [resolvable:$true] %s14
      %17 = dma.hbm_to_vmem [thread:$0]  %s0, 128, %s15, [#allocation3]
    $region5: #{tpu_custom_call.1} parent=1 // pred_fallthru
      _
    // Predicated region
    $region6: #{tpu_custom_call.1} parent=1 // pred_check
      _
    $region7: #{tpu_custom_call.1} parent=1 // pred_check_branch
      %19 = sbr.rel (0) target = $region9
    $region8: #{tpu_custom_call.1} parent=1 // pred_region
      %20 = dma.done [#allocation3], 128
    $region9: #{tpu_custom_call.1} parent=1 // pred_fallthru
      _
    %v21 = vld [vmem:[#allocation2] sm:$0xff]
    %22 = vrot.lane.b32.xlu0 %v21, 1
    %v23 = vpop.permute.xlu0 %22
    %24 = vst [vmem:[#allocation5] sm:$0xff] %v23
    // Predicated region
    $region10: #{tpu_custom_call.1} parent=1 // pred_check
      _
    $region11: #{tpu_custom_call.1} parent=1 // pred_check_branch
      %26 = sbr.rel (0) target = $region13
    $region12: #{tpu_custom_call.1} parent=1 // pred_region
      %s28 = ssub.s32 128, 128
      %29 = vsyncadd [#allocation4], %s28
      %s31 = sshll.u32 [#allocation5], 4
      %s32 = int_to_ptr.vmem [resolvable:$true] %s31
      %34 = dma.vmem_to_hbm [thread:$0]  %s32, 128, %s1, [#allocation4]
    $region13: #{tpu_custom_call.1} parent=1 // pred_fallthru
      _
    // Predicated region
    $region14: #{tpu_custom_call.1} parent=1 // pred_check
      _
    $region15: #{tpu_custom_call.1} parent=1 // pred_check_branch
      %36 = sbr.rel (0) target = $region17
    $region16: #{tpu_custom_call.1} parent=1 // pred_region
      %37 = dma.done [#allocation4], 128
    $region17: #{tpu_custom_call.1} parent=1 // pred_fallthru
      _
    %38 = vsyncpa [#allocation3], 1
    %39 = vsyncpa [#allocation4], 1

// kernel: tpu_custom_call.1
$region0: #{tpu_custom_call.1}
  #allocation0 [shape = 'u32[]', space=smem, size = 0x4, offset = 0x4, fixed_abs, tag = 'smem constant byte address 0x4 - core index']
  #allocation1 [shape = 'u32[144,128]{1,0:T(1,128)}', space=vmem, size = 0x12000, scoped, tag = 'internal scratch']
  #allocation2 [shape = 'f32[2,2,512]{2,1,0:T(2,128)}', space=vmem, size = 0x2000, scoped, tag = 'scratch operand']
  #allocation3 [shape = 'f32[1]{0:T(128)S(6)}', space=smem, size = 0x200, scoped, tag = 'scoped memory for tpu_custom_call.1']
  %s0 = inlined_call_operand.vmem [shape: f32[98], index: 0, kind: input, shape index: {}]
  %s1 = inlined_call_operand.<no memory space> [shape: f32[1], index: 1, kind: input, shape index: {}]
  %s2 = inlined_call_operand.hbm [shape: f32[2,4,256], index: 2, kind: input, shape index: {}]
  %s3 = inlined_call_operand.hbm [shape: f32[2,4,256], index: 3, kind: output, shape index: {}]
  %s4 = sld [smem:[#allocation0]]
  $region30: #{tpu_custom_call.1} parent=0
    _
  %s6 = ssub.s32 1, %s4
  %s7 = scalar_select 0, %s6, %s4
  %8 = sst [smem:[#allocation3]] %s1
  $region1: #{tpu_custom_call.1} parent=0
    #allocation4 [shape = 'u8[512]{0}', space=smem, size = 0x200, scoped, tag = 'input window, operand 0, single buffered']
    #allocation5 [shape = 's32[1]{0}', space=sflag, size = 0x4, scoped, tag = 'scoped memory for tpu_custom_call.1']
    #allocation6 [shape = 's32[1]{0}', space=sflag, size = 0x4, scoped, tag = 'scoped memory for tpu_custom_call.1']
    #allocation7 [shape = 's32[1]{0}', space=sflag, size = 0x4, scoped, tag = 'scoped memory for tpu_custom_call.1']
    #allocation8 [shape = 'u8[8192]{0}', space=vmem, size = 0x2000, scoped, tag = 'input window, operand 2, single buffered']
    #allocation9 [shape = 'u8[8192]{0}', space=vmem, size = 0x2000, scoped, tag = 'output window, operand 0, single buffered']
    %9 = vsyncpa [#allocation7], 0
    %10 = vsyncpa [#allocation5], 0
    %11 = vsyncpa [#allocation6], 0
    // Predicated region
    $region2: #{tpu_custom_call.1} parent=1 // pred_check
      _
    $region3: #{tpu_custom_call.1} parent=1 // pred_check_branch
      %13 = sbr.rel (0) target = $region5
    $region4: #{tpu_custom_call.1} parent=1 // pred_region
      %s15 = ssub.s32 16, 16
      %16 = vsyncadd [#allocation7], %s15
      %s18 = sshll.u32 %s0, 4
      %s19 = int_to_ptr.vmem [resolvable:$true] %s18
      %21 = dma.vmem_to_smem %s19, 16, [#allocation4], [#allocation7]
    $region5: #{tpu_custom_call.1} parent=1 // pred_fallthru
      _
    // Predicated region
    $region6: #{tpu_custom_call.1} parent=1 // pred_check
      _
    $region7: #{tpu_custom_call.1} parent=1 // pred_check_branch
      %23 = sbr.rel (0) target = $region9
    $region8: #{tpu_custom_call.1} parent=1 // pred_region
      _
    $region9: #{tpu_custom_call.1} parent=1 // pred_fallthru
      _
    // Predicated region
    $region10: #{tpu_custom_call.1} parent=1 // pred_check
      _
    $region11: #{tpu_custom_call.1} parent=1 // pred_check_branch
      %25 = sbr.rel (0) target = $region13
    $region12: #{tpu_custom_call.1} parent=1 // pred_region
      %s27 = ssub.s32 256, 256
      %28 = vsyncadd [#allocation5], %s27
      %s29 = sshll.u32 [#allocation8], 4
      %s30 = int_to_ptr.vmem [resolvable:$true] %s29
      %35 = dma.hbm_to_vmem [thread:$0]  %s2, 256, %s30, [#allocation5], 128, 128, 8
    $region13: #{tpu_custom_call.1} parent=1 // pred_fallthru
      _
    // Predicated region
    $region14: #{tpu_custom_call.1} parent=1 // pred_check
      _
    $region15: #{tpu_custom_call.1} parent=1 // pred_check_branch
      %37 = sbr.rel (0) target = $region17
    $region16: #{tpu_custom_call.1} parent=1 // pred_region
      %38 = dma.done [#allocation7], 16
    $region17: #{tpu_custom_call.1} parent=1 // pred_fallthru
      _
    // Predicated region
    $region18: #{tpu_custom_call.1} parent=1 // pred_check
      _
    $region19: #{tpu_custom_call.1} parent=1 // pred_check_branch
      %40 = sbr.rel (0) target = $region21
    $region20: #{tpu_custom_call.1} parent=1 // pred_region
      %41 = dma.done [#allocation5], 256
    $region21: #{tpu_custom_call.1} parent=1 // pred_fallthru
      _
    %42 = sfence
    %s43 = smul.u32 0, 2
    %s44 = smul.addr %s43, 4
    %s45 = scalar_lea.vmem [#allocation8], %s44
    %v46 = vld [vmem:[%s45] sm:$0xff]
    %v47 = vadd.f32 %v46, 0.0
    %v49 = vcombine.high %v46, %v46
    %vm51 = vcmask 1043456
    %v52 = vsel %vm51, %v46, -inf
    %v53 = vrot.slane %v52, 4
    %v54 = vmax.f32 %v52, %v53
    %v55 = vrot.slane %v54, 2
    %v56 = vmax.f32 %v54, %v55
    %v57 = vrot.slane %v56, 1
    %v58 = vmax.f32 %v56, %v57
    %v59 = vsel %vm51, %v49, -inf
    %v60 = vrot.slane %v59, 4
    %v61 = vmax.f32 %v59, %v60
    %v62 = vrot.slane %v61, 2
    %v63 = vmax.f32 %v61, %v62
    %v64 = vrot.slane %v63, 1
    %v65 = vmax.f32 %v63, %v64
    %v67 = vcombine.high %v47, %v47
    %v69 = vsel %vm51, %v47, 0.0
    %v70 = vrot.slane %v69, 4
    %v71 = vadd.f32 %v69, %v70
    %v72 = vrot.slane %v71, 2
    %v73 = vadd.f32 %v71, %v72
    %v74 = vrot.slane %v73, 1
    %v75 = vadd.f32 %v73, %v74
    %v76 = vsel %vm51, %v67, 0.0
    %v77 = vrot.slane %v76, 4
    %v78 = vadd.f32 %v76, %v77
    %v79 = vrot.slane %v78, 2
    %v80 = vadd.f32 %v78, %v79
    %v81 = vrot.slane %v80, 1
    %v82 = vadd.f32 %v80, %v81
    %v85 = vcombine.low %v58, %v65
    %v87 = vunpack.c.l.s4 1966171168
    %v88 = vunpack.c.0.s8 %v87
    %v89 = vlaneseq
    %v90 = vshrl.u32 %v89, 7
    %v91 = vsub.s32 %v88, %v90
    %v92 = vrot.slane %v85, %v91
    %v94 = vunpack.c.l.s4 1966171168
    %v95 = vunpack.c.0.s8 %v94
    %v96 = vlaneseq
    %v97 = vshrl.u32 %v96, 7
    %v98 = vsub.s32 %v95, %v97
    %v99 = vrot.slane %v92, %v98
    %v101 = vlaneseq
    %vm102 = vcmp.ge.s32.totalorder %v101, 0
    %vm103 = vcmp.lt.s32.totalorder %v101, 256
    %vm104 = vmand %vm102, %vm103
    %s105 = scalar_lea.vmem [#allocation2], 2
    %106 = vst.msk [vmem:[%s105] ss:$2 sm:$0x3] %vm104, %v99
    %v107 = vmul.f32 %v75, 0.25
    %v108 = vmul.f32 %v82, 0.25
    %v111 = vcombine.low %v107, %v108
    %v113 = vunpack.c.l.s4 1966171168
    %v114 = vunpack.c.0.s8 %v113
    %v115 = vlaneseq
    %v116 = vshrl.u32 %v115, 7
    %v117 = vsub.s32 %v114, %v116
    %v118 = vrot.slane %v111, %v117
    %v120 = vunpack.c.l.s4 1966171168
    %v121 = vunpack.c.0.s8 %v120
    %v122 = vlaneseq
    %v123 = vshrl.u32 %v122, 7
    %v124 = vsub.s32 %v121, %v123
    %v125 = vrot.slane %v118, %v124
    %s127 = scalar_lea.vmem [#allocation2], 8
    %s128 = scalar_lea.vmem %s127, 2 [#allocation2]
    %129 = vst.msk [vmem:[%s128] ss:$2 sm:$0x3] %vm104, %v125
    %s130 = scalar_lea.vmem [#allocation8], 8
    %s131 = smul.addr %s43, 4
    %s132 = scalar_lea.vmem %s130, %s131 [#allocation8]
    %v133 = vld [vmem:[%s132] sm:$0xff]
    %v134 = vadd.f32 %v133, 0.0
    %v136 = vcombine.high %v133, %v133
    %v138 = vsel %vm51, %v133, -inf
    %v139 = vrot.slane %v138, 4
    %v140 = vmax.f32 %v138, %v139
    %v141 = vrot.slane %v140, 2
    %v142 = vmax.f32 %v140, %v141
    %v143 = vrot.slane %v142, 1
    %v144 = vmax.f32 %v142, %v143
    %v145 = vsel %vm51, %v136, -inf
    %v146 = vrot.slane %v145, 4
    %v147 = vmax.f32 %v145, %v146
    %v148 = vrot.slane %v147, 2
    %v149 = vmax.f32 %v147, %v148
    %v150 = vrot.slane %v149, 1
    %v151 = vmax.f32 %v149, %v150
    %v153 = vcombine.high %v134, %v134
    %v155 = vsel %vm51, %v134, 0.0
    %v156 = vrot.slane %v155, 4
    %v157 = vadd.f32 %v155, %v156
    %v158 = vrot.slane %v157, 2
    %v159 = vadd.f32 %v157, %v158
    %v160 = vrot.slane %v159, 1
    %v161 = vadd.f32 %v159, %v160
    %v162 = vsel %vm51, %v153, 0.0
    %v163 = vrot.slane %v162, 4
    %v164 = vadd.f32 %v162, %v163
    %v165 = vrot.slane %v164, 2
    %v166 = vadd.f32 %v164, %v165
    %v167 = vrot.slane %v166, 1
    %v168 = vadd.f32 %v166, %v167
    %v171 = vcombine.low %v144, %v151
    %v173 = vunpack.c.l.s4 1966171168
    %v174 = vunpack.c.0.s8 %v173
    %v175 = vlaneseq
    %v176 = vshrl.u32 %v175, 7
    %v177 = vsub.s32 %v174, %v176
    %v178 = vrot.slane %v171, %v177
    %v180 = vunpack.c.l.s4 1966171168
    %v181 = vunpack.c.0.s8 %v180
    %v182 = vlaneseq
    %v183 = vshrl.u32 %v182, 7
    %v184 = vsub.s32 %v181, %v183
    %v185 = vrot.slane %v178, %v184
    %s187 = scalar_lea.vmem [#allocation2], 3
    %188 = vst.msk [vmem:[%s187] ss:$2 sm:$0x3] %vm104, %v185
    %v189 = vmul.f32 %v161, 0.25
    %v190 = vmul.f32 %v168, 0.25
    %v193 = vcombine.low %v189, %v190
    %v195 = vunpack.c.l.s4 1966171168
    %v196 = vunpack.c.0.s8 %v195
    %v197 = vlaneseq
    %v198 = vshrl.u32 %v197, 7
    %v199 = vsub.s32 %v196, %v198
    %v200 = vrot.slane %v193, %v199
    %v202 = vunpack.c.l.s4 1966171168
    %v203 = vunpack.c.0.s8 %v202
    %v204 = vlaneseq
    %v205 = vshrl.u32 %v204, 7
    %v206 = vsub.s32 %v203, %v205
    %v207 = vrot.slane %v200, %v206
    %s209 = scalar_lea.vmem %s127, 3 [#allocation2]
    %210 = vst.msk [vmem:[%s209] ss:$2 sm:$0x3] %vm104, %v207
    %211 = vst [vmem:[#allocation2] sm:$0x3] 0.0
    %212 = vst [vmem:[#allocation2 + $0x8] sm:$0x3] 0.0
    %213 = vst [vmem:[#allocation2 + $0x6] sm:$0x3] 0.0
    %214 = vst [vmem:[#allocation2 + $0xe] sm:$0x3] 0.0
    %s215 = sld [smem:[#allocation4]]
    %v216 = vld [vmem:[#allocation2] sm:$0x3f]
    %v217 = vstv %s215
    %v218 = vmul.f32 %v216, %v217
    %v219 = vadd.f32 %v218, 0.0
    %s220 = sld [smem:[#allocation4 + $0x1]]
    %v221 = vstv %s220
    %v222 = vmul.f32 %v216, %v221
    %v223 = vadd.f32 %v222, 0.0
    %s224 = sld [smem:[#allocation4 + $0x2]]
    %v225 = vstv %s224
    %v226 = vmul.f32 %v216, %v225
    %v227 = vadd.f32 %v226, 0.0
    %s228 = sld [smem:[#allocation4 + $0x3]]
    %v229 = vstv %s228
    %v230 = vmul.f32 %v216, %v229
    %v231 = vadd.f32 %v230, 0.0
    %s232 = sld [smem:[#allocation4 + $0x4]]
    %v233 = vstv %s232
    %v234 = vmul.f32 %v216, %v233
    %v235 = vadd.f32 %v234, 0.0
    %s236 = sld [smem:[#allocation4 + $0x5]]
    %v237 = vstv %s236
    %v238 = vmul.f32 %v216, %v237
    %v239 = vadd.f32 %v238, 0.0
    %s240 = sld [smem:[#allocation4 + $0x6]]
    %v241 = vstv %s240
    %v242 = vmul.f32 %v216, %v241
    %v243 = vadd.f32 %v242, 0.0
    %s244 = sld [smem:[#allocation4 + $0x7]]
    %v245 = vstv %s244
    %v246 = vmul.f32 %v216, %v245
    %248 = vrot.lane.b32.xlu0 %v246, 112
    %v249 = vpop.permute.xlu0 %248
    %v250 = vrot.slane %v249, 2
    %vm251 = vcmask 916480
    %v252 = vsel %vm251, %v249, %v250
    %v254 = vadd.f32 %v219, %v252
    %s255 = sld [smem:[#allocation4 + $0x8]]
    %v256 = vstv %s255
    %v257 = vmul.f32 %v216, %v256
    %259 = vrot.lane.b32.xlu0 %v257, 112
    %v260 = vpop.permute.xlu0 %259
    %v261 = vrot.slane %v260, 2
    %v262 = vsel %vm251, %v260, %v261
    %v264 = vadd.f32 %v223, %v262
    %s265 = sld [smem:[#allocation4 + $0x9]]
    %v266 = vstv %s265
    %v267 = vmul.f32 %v216, %v266
    %269 = vrot.lane.b32.xlu0 %v267, 112
    %v270 = vpop.permute.xlu0 %269
    %v271 = vrot.slane %v270, 2
    %v272 = vsel %vm251, %v270, %v271
    %v274 = vadd.f32 %v227, %v272
    %s275 = sld [smem:[#allocation4 + $0xa]]
    %v276 = vstv %s275
    %v277 = vmul.f32 %v216, %v276
    %279 = vrot.lane.b32.xlu0 %v277, 112
    %v280 = vpop.permute.xlu0 %279
    %v281 = vrot.slane %v280, 2
    %v282 = vsel %vm251, %v280, %v281
    %v284 = vadd.f32 %v231, %v282
    %s285 = sld [smem:[#allocation4 + $0xb]]
    %v286 = vstv %s285
    %v287 = vmul.f32 %v216, %v286
    %289 = vrot.lane.b32.xlu0 %v287, 112
    %v290 = vpop.permute.xlu0 %289
    %v291 = vrot.slane %v290, 2
    %v292 = vsel %vm251, %v290, %v291
    %v294 = vadd.f32 %v235, %v292
    %s295 = sld [smem:[#allocation4 + $0xc]]
    %v296 = vstv %s295
    %v297 = vmul.f32 %v216, %v296
    %299 = vrot.lane.b32.xlu0 %v297, 112
    %v300 = vpop.permute.xlu0 %299
    %v301 = vrot.slane %v300, 2
    %v302 = vsel %vm251, %v300, %v301
    %v304 = vadd.f32 %v239, %v302
    %s305 = sld [smem:[#allocation4 + $0xd]]
    %v306 = vstv %s305
    %v307 = vmul.f32 %v216, %v306
    %309 = vrot.lane.b32.xlu0 %v307, 112
    %v310 = vpop.permute.xlu0 %309
    %v311 = vrot.slane %v310, 2
    %v312 = vsel %vm251, %v310, %v311
    %v314 = vadd.f32 %v243, %v312
    %s315 = sld [smem:[#allocation4 + $0xe]]
    %v316 = vstv %s315
    %v317 = vmul.f32 %v216, %v316
    %319 = vrot.lane.b32.xlu0 %v317, 96
    %v320 = vpop.permute.xlu0 %319
    %v321 = vrot.slane %v320, 2
    %vm322 = vcmask 785408
    %v323 = vsel %vm322, %v320, %v321
    %v325 = vadd.f32 %v254, %v323
    %s326 = sld [smem:[#allocation4 + $0xf]]
    %v327 = vstv %s326
    %v328 = vmul.f32 %v216, %v327
    %330 = vrot.lane.b32.xlu0 %v328, 96
    %v331 = vpop.permute.xlu0 %330
    %v332 = vrot.slane %v331, 2
    %v333 = vsel %vm322, %v331, %v332
    %v335 = vadd.f32 %v264, %v333
    %s336 = sld [smem:[#allocation4 + $0x10]]
    %v337 = vstv %s336
    %v338 = vmul.f32 %v216, %v337
    %340 = vrot.lane.b32.xlu0 %v338, 96
    %v341 = vpop.permute.xlu0 %340
    %v342 = vrot.slane %v341, 2
    %v343 = vsel %vm322, %v341, %v342
    %v345 = vadd.f32 %v274, %v343
    %s346 = sld [smem:[#allocation4 + $0x11]]
    %v347 = vstv %s346
    %v348 = vmul.f32 %v216, %v347
    %350 = vrot.lane.b32.xlu0 %v348, 96
    %v351 = vpop.permute.xlu0 %350
    %v352 = vrot.slane %v351, 2
    %v353 = vsel %vm322, %v351, %v352
    %v355 = vadd.f32 %v284, %v353
    %s356 = sld [smem:[#allocation4 + $0x12]]
    %v357 = vstv %s356
    %v358 = vmul.f32 %v216, %v357
    %360 = vrot.lane.b32.xlu0 %v358, 96
    %v361 = vpop.permute.xlu0 %360
    %v362 = vrot.slane %v361, 2
    %v363 = vsel %vm322, %v361, %v362
    %v365 = vadd.f32 %v294, %v363
    %s366 = sld [smem:[#allocation4 + $0x13]]
    %v367 = vstv %s366
    %v368 = vmul.f32 %v216, %v367
    %370 = vrot.lane.b32.xlu0 %v368, 96
    %v371 = vpop.permute.xlu0 %370
    %v372 = vrot.slane %v371, 2
    %v373 = vsel %vm322, %v371, %v372
    %v375 = vadd.f32 %v304, %v373
    %s376 = sld [smem:[#allocation4 + $0x14]]
    %v377 = vstv %s376
    %v378 = vmul.f32 %v216, %v377
    %380 = vrot.lane.b32.xlu0 %v378, 96
    %v381 = vpop.permute.xlu0 %380
    %v382 = vrot.slane %v381, 2
    %v383 = vsel %vm322, %v381, %v382
    %v385 = vadd.f32 %v314, %v383
    %s386 = sld [smem:[#allocation4 + $0x15]]
    %v387 = vstv %s386
    %v388 = vmul.f32 %v216, %v387
    %390 = vrot.lane.b32.xlu0 %v388, 80
    %v391 = vpop.permute.xlu0 %390
    %v392 = vrot.slane %v391, 2
    %vm393 = vcmask 654336
    %v394 = vsel %vm393, %v391, %v392
    %v396 = vadd.f32 %v325, %v394
    %s397 = sld [smem:[#allocation4 + $0x16]]
    %v398 = vstv %s397
    %v399 = vmul.f32 %v216, %v398
    %401 = vrot.lane.b32.xlu0 %v399, 80
    %v402 = vpop.permute.xlu0 %401
    %v403 = vrot.slane %v402, 2
    %v404 = vsel %vm393, %v402, %v403
    %v406 = vadd.f32 %v335, %v404
    %s407 = sld [smem:[#allocation4 + $0x17]]
    %v408 = vstv %s407
    %v409 = vmul.f32 %v216, %v408
    %411 = vrot.lane.b32.xlu0 %v409, 80
    %v412 = vpop.permute.xlu0 %411
    %v413 = vrot.slane %v412, 2
    %v414 = vsel %vm393, %v412, %v413
    %v416 = vadd.f32 %v345, %v414
    %s417 = sld [smem:[#allocation4 + $0x18]]
    %v418 = vld [vmem:[#allocation2 + $0x2] sm:$0xf]
    %v419 = vstv %s417
    %v420 = vmul.f32 %v418, %v419
    %422 = vrot.lane.b32.xlu0 %v420, 80
    %v423 = vpop.permute.xlu0 %422
    %v424 = vrot.slane %v423, 6
    %v425 = vsel %vm393, %v424, %v423
    %v427 = vadd.f32 %v355, %v425
    %s428 = sld [smem:[#allocation4 + $0x19]]
    %v429 = vld [vmem:[#allocation2 + $0x2] sm:$0x3f]
    %v430 = vstv %s428
    %v431 = vmul.f32 %v429, %v430
    %433 = vrot.lane.b32.xlu0 %v431, 80
    %v434 = vpop.permute.xlu0 %433
    %v435 = vrot.slane %v434, 6
    %v436 = vsel %vm393, %v435, %v434
    %v438 = vadd.f32 %v365, %v436
    %s439 = sld [smem:[#allocation4 + $0x1a]]
    %v440 = vstv %s439
    %v441 = vmul.f32 %v429, %v440
    %443 = vrot.lane.b32.xlu0 %v441, 80
    %v444 = vpop.permute.xlu0 %443
    %v445 = vrot.slane %v444, 6
    %v446 = vsel %vm393, %v445, %v444
    %v448 = vadd.f32 %v375, %v446
    %s449 = sld [smem:[#allocation4 + $0x1b]]
    %v450 = vstv %s449
    %v451 = vmul.f32 %v429, %v450
    %453 = vrot.lane.b32.xlu0 %v451, 80
    %v454 = vpop.permute.xlu0 %453
    %v455 = vrot.slane %v454, 6
    %v456 = vsel %vm393, %v455, %v454
    %v458 = vadd.f32 %v385, %v456
    %s459 = sld [smem:[#allocation4 + $0x1c]]
    %v460 = vstv %s459
    %v461 = vmul.f32 %v429, %v460
    %463 = vrot.lane.b32.xlu0 %v461, 64
    %v464 = vpop.permute.xlu0 %463
    %v465 = vrot.slane %v464, 6
    %vm466 = vcmask 523264
    %v467 = vsel %vm466, %v465, %v464
    %v469 = vadd.f32 %v396, %v467
    %s470 = sld [smem:[#allocation4 + $0x1d]]
    %v471 = vstv %s470
    %v472 = vmul.f32 %v429, %v471
    %474 = vrot.lane.b32.xlu0 %v472, 64
    %v475 = vpop.permute.xlu0 %474
    %v476 = vrot.slane %v475, 6
    %v477 = vsel %vm466, %v476, %v475
    %v479 = vadd.f32 %v406, %v477
    %s480 = sld [smem:[#allocation4 + $0x1e]]
    %v481 = vstv %s480
    %v482 = vmul.f32 %v429, %v481
    %484 = vrot.lane.b32.xlu0 %v482, 64
    %v485 = vpop.permute.xlu0 %484
    %v486 = vrot.slane %v485, 6
    %v487 = vsel %vm466, %v486, %v485
    %v489 = vadd.f32 %v416, %v487
    %s490 = sld [smem:[#allocation4 + $0x1f]]
    %v491 = vstv %s490
    %v492 = vmul.f32 %v429, %v491
    %494 = vrot.lane.b32.xlu0 %v492, 64
    %v495 = vpop.permute.xlu0 %494
    %v496 = vrot.slane %v495, 6
    %v497 = vsel %vm466, %v496, %v495
    %v499 = vadd.f32 %v427, %v497
    %s500 = sld [smem:[#allocation4 + $0x20]]
    %v501 = vstv %s500
    %v502 = vmul.f32 %v429, %v501
    %504 = vrot.lane.b32.xlu0 %v502, 64
    %v505 = vpop.permute.xlu0 %504
    %v506 = vrot.slane %v505, 6
    %v507 = vsel %vm466, %v506, %v505
    %v509 = vadd.f32 %v438, %v507
    %s510 = sld [smem:[#allocation4 + $0x21]]
    %v511 = vstv %s510
    %v512 = vmul.f32 %v429, %v511
    %514 = vrot.lane.b32.xlu0 %v512, 64
    %v515 = vpop.permute.xlu0 %514
    %v516 = vrot.slane %v515, 6
    %v517 = vsel %vm466, %v516, %v515
    %v519 = vadd.f32 %v448, %v517
    %s520 = sld [smem:[#allocation4 + $0x22]]
    %v521 = vstv %s520
    %v522 = vmul.f32 %v429, %v521
    %524 = vrot.lane.b32.xlu0 %v522, 64
    %v525 = vpop.permute.xlu0 %524
    %v526 = vrot.slane %v525, 6
    %v527 = vsel %vm466, %v526, %v525
    %v529 = vadd.f32 %v458, %v527
    %s530 = sld [smem:[#allocation4 + $0x23]]
    %v531 = vstv %s530
    %v532 = vmul.f32 %v429, %v531
    %534 = vrot.lane.b32.xlu0 %v532, 48
    %v535 = vpop.permute.xlu0 %534
    %v536 = vrot.slane %v535, 6
    %vm537 = vcmask 392192
    %v538 = vsel %vm537, %v536, %v535
    %v540 = vadd.f32 %v469, %v538
    %s541 = sld [smem:[#allocation4 + $0x24]]
    %v542 = vstv %s541
    %v543 = vmul.f32 %v429, %v542
    %545 = vrot.lane.b32.xlu0 %v543, 48
    %v546 = vpop.permute.xlu0 %545
    %v547 = vrot.slane %v546, 6
    %v548 = vsel %vm537, %v547, %v546
    %v550 = vadd.f32 %v479, %v548
    %s551 = sld [smem:[#allocation4 + $0x25]]
    %v552 = vstv %s551
    %v553 = vmul.f32 %v429, %v552
    %555 = vrot.lane.b32.xlu0 %v553, 48
    %v556 = vpop.permute.xlu0 %555
    %v557 = vrot.slane %v556, 6
    %v558 = vsel %vm537, %v557, %v556
    %v560 = vadd.f32 %v489, %v558
    %s561 = sld [smem:[#allocation4 + $0x26]]
    %v562 = vstv %s561
    %v563 = vmul.f32 %v429, %v562
    %565 = vrot.lane.b32.xlu0 %v563, 48
    %v566 = vpop.permute.xlu0 %565
    %v567 = vrot.slane %v566, 6
    %v568 = vsel %vm537, %v567, %v566
    %v570 = vadd.f32 %v499, %v568
    %s571 = sld [smem:[#allocation4 + $0x27]]
    %v572 = vstv %s571
    %v573 = vmul.f32 %v429, %v572
    %575 = vrot.lane.b32.xlu0 %v573, 48
    %v576 = vpop.permute.xlu0 %575
    %v577 = vrot.slane %v576, 6
    %v578 = vsel %vm537, %v577, %v576
    %v580 = vadd.f32 %v509, %v578
    %s581 = sld [smem:[#allocation4 + $0x28]]
    %v582 = vstv %s581
    %v583 = vmul.f32 %v429, %v582
    %585 = vrot.lane.b32.xlu0 %v583, 48
    %v586 = vpop.permute.xlu0 %585
    %v587 = vrot.slane %v586, 6
    %v588 = vsel %vm537, %v587, %v586
    %v590 = vadd.f32 %v519, %v588
    %s591 = sld [smem:[#allocation4 + $0x29]]
    %v592 = vstv %s591
    %v593 = vmul.f32 %v429, %v592
    %595 = vrot.lane.b32.xlu0 %v593, 48
    %v596 = vpop.permute.xlu0 %595
    %v597 = vrot.slane %v596, 6
    %v598 = vsel %vm537, %v597, %v596
    %v600 = vadd.f32 %v529, %v598
    %s601 = sld [smem:[#allocation4 + $0x2a]]
    %v602 = vstv %s601
    %v603 = vmul.f32 %v429, %v602
    %605 = vrot.lane.b32.xlu0 %v603, 32
    %v606 = vpop.permute.xlu0 %605
    %v607 = vrot.slane %v606, 6
    %vm608 = vcmask 261120
    %v609 = vsel %vm608, %v607, %v606
    %v611 = vadd.f32 %v540, %v609
    %s612 = sld [smem:[#allocation4 + $0x2b]]
    %v613 = vstv %s612
    %v614 = vmul.f32 %v429, %v613
    %616 = vrot.lane.b32.xlu0 %v614, 32
    %v617 = vpop.permute.xlu0 %616
    %v618 = vrot.slane %v617, 6
    %v619 = vsel %vm608, %v618, %v617
    %v621 = vadd.f32 %v550, %v619
    %s622 = sld [smem:[#allocation4 + $0x2c]]
    %v623 = vstv %s622
    %v624 = vmul.f32 %v429, %v623
    %626 = vrot.lane.b32.xlu0 %v624, 32
    %v627 = vpop.permute.xlu0 %626
    %v628 = vrot.slane %v627, 6
    %v629 = vsel %vm608, %v628, %v627
    %v631 = vadd.f32 %v560, %v629
    %s632 = sld [smem:[#allocation4 + $0x2d]]
    %v633 = vstv %s632
    %v634 = vmul.f32 %v429, %v633
    %636 = vrot.lane.b32.xlu0 %v634, 32
    %v637 = vpop.permute.xlu0 %636
    %v638 = vrot.slane %v637, 6
    %v639 = vsel %vm608, %v638, %v637
    %v641 = vadd.f32 %v570, %v639
    %s642 = sld [smem:[#allocation4 + $0x2e]]
    %v643 = vstv %s642
    %v644 = vmul.f32 %v429, %v643
    %646 = vrot.lane.b32.xlu0 %v644, 32
    %v647 = vpop.permute.xlu0 %646
    %v648 = vrot.slane %v647, 6
    %v649 = vsel %vm608, %v648, %v647
    %v651 = vadd.f32 %v580, %v649
    %s652 = sld [smem:[#allocation4 + $0x2f]]
    %v653 = vstv %s652
    %v654 = vmul.f32 %v429, %v653
    %656 = vrot.lane.b32.xlu0 %v654, 32
    %v657 = vpop.permute.xlu0 %656
    %v658 = vrot.slane %v657, 6
    %v659 = vsel %vm608, %v658, %v657
    %v661 = vadd.f32 %v590, %v659
    %s662 = sld [smem:[#allocation4 + $0x30]]
    %v663 = vstv %s662
    %v664 = vmul.f32 %v429, %v663
    %666 = vrot.lane.b32.xlu0 %v664, 32
    %v667 = vpop.permute.xlu0 %666
    %v668 = vrot.slane %v667, 6
    %v669 = vsel %vm608, %v668, %v667
    %v671 = vadd.f32 %v600, %v669
    %s672 = sld [smem:[#allocation4 + $0x31]]
    %v673 = vld [vmem:[%s127] sm:$0x3f]
    %v674 = vstv %s672
    %v675 = vmul.f32 %v673, %v674
    %v676 = vadd.f32 %v611, %v675
    %s677 = sld [smem:[#allocation4 + $0x32]]
    %v678 = vstv %s677
    %v679 = vmul.f32 %v673, %v678
    %v680 = vadd.f32 %v621, %v679
    %s681 = sld [smem:[#allocation4 + $0x33]]
    %v682 = vstv %s681
    %v683 = vmul.f32 %v673, %v682
    %v684 = vadd.f32 %v631, %v683
    %s685 = sld [smem:[#allocation4 + $0x34]]
    %v686 = vstv %s685
    %v687 = vmul.f32 %v673, %v686
    %v688 = vadd.f32 %v641, %v687
    %s689 = sld [smem:[#allocation4 + $0x35]]
    %v690 = vstv %s689
    %v691 = vmul.f32 %v673, %v690
    %v692 = vadd.f32 %v651, %v691
    %s693 = sld [smem:[#allocation4 + $0x36]]
    %v694 = vstv %s693
    %v695 = vmul.f32 %v673, %v694
    %v696 = vadd.f32 %v661, %v695
    %s697 = sld [smem:[#allocation4 + $0x37]]
    %v698 = vstv %s697
    %v699 = vmul.f32 %v673, %v698
    %v700 = vadd.f32 %v671, %v699
    %s701 = sld [smem:[#allocation4 + $0x38]]
    %v702 = vstv %s701
    %v703 = vmul.f32 %v673, %v702
    %705 = vrot.lane.b32.xlu0 %v703, 112
    %v706 = vpop.permute.xlu0 %705
    %v707 = vrot.slane %v706, 2
    %v708 = vsel %vm251, %v706, %v707
    %v710 = vadd.f32 %v676, %v708
    %s711 = sld [smem:[#allocation4 + $0x39]]
    %v712 = vstv %s711
    %v713 = vmul.f32 %v673, %v712
    %715 = vrot.lane.b32.xlu0 %v713, 112
    %v716 = vpop.permute.xlu0 %715
    %v717 = vrot.slane %v716, 2
    %v718 = vsel %vm251, %v716, %v717
    %v720 = vadd.f32 %v680, %v718
    %s721 = sld [smem:[#allocation4 + $0x3a]]
    %v722 = vstv %s721
    %v723 = vmul.f32 %v673, %v722
    %725 = vrot.lane.b32.xlu0 %v723, 112
    %v726 = vpop.permute.xlu0 %725
    %v727 = vrot.slane %v726, 2
    %v728 = vsel %vm251, %v726, %v727
    %v730 = vadd.f32 %v684, %v728
    %s731 = sld [smem:[#allocation4 + $0x3b]]
    %v732 = vstv %s731
    %v733 = vmul.f32 %v673, %v732
    %735 = vrot.lane.b32.xlu0 %v733, 112
    %v736 = vpop.permute.xlu0 %735
    %v737 = vrot.slane %v736, 2
    %v738 = vsel %vm251, %v736, %v737
    %v740 = vadd.f32 %v688, %v738
    %s741 = sld [smem:[#allocation4 + $0x3c]]
    %v742 = vstv %s741
    %v743 = vmul.f32 %v673, %v742
    %745 = vrot.lane.b32.xlu0 %v743, 112
    %v746 = vpop.permute.xlu0 %745
    %v747 = vrot.slane %v746, 2
    %v748 = vsel %vm251, %v746, %v747
    %v750 = vadd.f32 %v692, %v748
    %s751 = sld [smem:[#allocation4 + $0x3d]]
    %v752 = vstv %s751
    %v753 = vmul.f32 %v673, %v752
    %755 = vrot.lane.b32.xlu0 %v753, 112
    %v756 = vpop.permute.xlu0 %755
    %v757 = vrot.slane %v756, 2
    %v758 = vsel %vm251, %v756, %v757
    %v760 = vadd.f32 %v696, %v758
    %s761 = sld [smem:[#allocation4 + $0x3e]]
    %v762 = vstv %s761
    %v763 = vmul.f32 %v673, %v762
    %765 = vrot.lane.b32.xlu0 %v763, 112
    %v766 = vpop.permute.xlu0 %765
    %v767 = vrot.slane %v766, 2
    %v768 = vsel %vm251, %v766, %v767
    %v770 = vadd.f32 %v700, %v768
    %s771 = sld [smem:[#allocation4 + $0x3f]]
    %v772 = vstv %s771
    %v773 = vmul.f32 %v673, %v772
    %775 = vrot.lane.b32.xlu0 %v773, 96
    %v776 = vpop.permute.xlu0 %775
    %v777 = vrot.slane %v776, 2
    %v778 = vsel %vm322, %v776, %v777
    %v780 = vadd.f32 %v710, %v778
    %s781 = sld [smem:[#allocation4 + $0x40]]
    %v782 = vstv %s781
    %v783 = vmul.f32 %v673, %v782
    %785 = vrot.lane.b32.xlu0 %v783, 96
    %v786 = vpop.permute.xlu0 %785
    %v787 = vrot.slane %v786, 2
    %v788 = vsel %vm322, %v786, %v787
    %v790 = vadd.f32 %v720, %v788
    %s791 = sld [smem:[#allocation4 + $0x41]]
    %v792 = vstv %s791
    %v793 = vmul.f32 %v673, %v792
    %795 = vrot.lane.b32.xlu0 %v793, 96
    %v796 = vpop.permute.xlu0 %795
    %v797 = vrot.slane %v796, 2
    %v798 = vsel %vm322, %v796, %v797
    %v800 = vadd.f32 %v730, %v798
    %s801 = sld [smem:[#allocation4 + $0x42]]
    %v802 = vstv %s801
    %v803 = vmul.f32 %v673, %v802
    %805 = vrot.lane.b32.xlu0 %v803, 96
    %v806 = vpop.permute.xlu0 %805
    %v807 = vrot.slane %v806, 2
    %v808 = vsel %vm322, %v806, %v807
    %v810 = vadd.f32 %v740, %v808
    %s811 = sld [smem:[#allocation4 + $0x43]]
    %v812 = vstv %s811
    %v813 = vmul.f32 %v673, %v812
    %815 = vrot.lane.b32.xlu0 %v813, 96
    %v816 = vpop.permute.xlu0 %815
    %v817 = vrot.slane %v816, 2
    %v818 = vsel %vm322, %v816, %v817
    %v820 = vadd.f32 %v750, %v818
    %s821 = sld [smem:[#allocation4 + $0x44]]
    %v822 = vstv %s821
    %v823 = vmul.f32 %v673, %v822
    %825 = vrot.lane.b32.xlu0 %v823, 96
    %v826 = vpop.permute.xlu0 %825
    %v827 = vrot.slane %v826, 2
    %v828 = vsel %vm322, %v826, %v827
    %v830 = vadd.f32 %v760, %v828
    %s831 = sld [smem:[#allocation4 + $0x45]]
    %v832 = vstv %s831
    %v833 = vmul.f32 %v673, %v832
    %835 = vrot.lane.b32.xlu0 %v833, 96
    %v836 = vpop.permute.xlu0 %835
    %v837 = vrot.slane %v836, 2
    %v838 = vsel %vm322, %v836, %v837
    %v840 = vadd.f32 %v770, %v838
    %s841 = sld [smem:[#allocation4 + $0x46]]
    %v842 = vstv %s841
    %v843 = vmul.f32 %v673, %v842
    %845 = vrot.lane.b32.xlu0 %v843, 80
    %v846 = vpop.permute.xlu0 %845
    %v847 = vrot.slane %v846, 2
    %v848 = vsel %vm393, %v846, %v847
    %v850 = vadd.f32 %v780, %v848
    %s851 = sld [smem:[#allocation4 + $0x47]]
    %v852 = vstv %s851
    %v853 = vmul.f32 %v673, %v852
    %855 = vrot.lane.b32.xlu0 %v853, 80
    %v856 = vpop.permute.xlu0 %855
    %v857 = vrot.slane %v856, 2
    %v858 = vsel %vm393, %v856, %v857
    %v860 = vadd.f32 %v790, %v858
    %s861 = sld [smem:[#allocation4 + $0x48]]
    %v862 = vstv %s861
    %v863 = vmul.f32 %v673, %v862
    %865 = vrot.lane.b32.xlu0 %v863, 80
    %v866 = vpop.permute.xlu0 %865
    %v867 = vrot.slane %v866, 2
    %v868 = vsel %vm393, %v866, %v867
    %v870 = vadd.f32 %v800, %v868
    %s871 = sld [smem:[#allocation4 + $0x49]]
    %v872 = vld [vmem:[%s127 + $0x2] sm:$0xf]
    %v873 = vstv %s871
    %v874 = vmul.f32 %v872, %v873
    %876 = vrot.lane.b32.xlu0 %v874, 80
    %v877 = vpop.permute.xlu0 %876
    %v878 = vrot.slane %v877, 6
    %v879 = vsel %vm393, %v878, %v877
    %v881 = vadd.f32 %v810, %v879
    %s882 = sld [smem:[#allocation4 + $0x4a]]
    %v883 = vld [vmem:[%s127 + $0x2] sm:$0x3f]
    %v884 = vstv %s882
    %v885 = vmul.f32 %v883, %v884
    %887 = vrot.lane.b32.xlu0 %v885, 80
    %v888 = vpop.permute.xlu0 %887
    %v889 = vrot.slane %v888, 6
    %v890 = vsel %vm393, %v889, %v888
    %v892 = vadd.f32 %v820, %v890
    %s893 = sld [smem:[#allocation4 + $0x4b]]
    %v894 = vstv %s893
    %v895 = vmul.f32 %v883, %v894
    %897 = vrot.lane.b32.xlu0 %v895, 80
    %v898 = vpop.permute.xlu0 %897
    %v899 = vrot.slane %v898, 6
    %v900 = vsel %vm393, %v899, %v898
    %v902 = vadd.f32 %v830, %v900
    %s903 = sld [smem:[#allocation4 + $0x4c]]
    %v904 = vstv %s903
    %v905 = vmul.f32 %v883, %v904
    %907 = vrot.lane.b32.xlu0 %v905, 80
    %v908 = vpop.permute.xlu0 %907
    %v909 = vrot.slane %v908, 6
    %v910 = vsel %vm393, %v909, %v908
    %v912 = vadd.f32 %v840, %v910
    %s913 = sld [smem:[#allocation4 + $0x4d]]
    %v914 = vstv %s913
    %v915 = vmul.f32 %v883, %v914
    %917 = vrot.lane.b32.xlu0 %v915, 64
    %v918 = vpop.permute.xlu0 %917
    %v919 = vrot.slane %v918, 6
    %v920 = vsel %vm466, %v919, %v918
    %v922 = vadd.f32 %v850, %v920
    %s923 = sld [smem:[#allocation4 + $0x4e]]
    %v924 = vstv %s923
    %v925 = vmul.f32 %v883, %v924
    %927 = vrot.lane.b32.xlu0 %v925, 64
    %v928 = vpop.permute.xlu0 %927
    %v929 = vrot.slane %v928, 6
    %v930 = vsel %vm466, %v929, %v928
    %v932 = vadd.f32 %v860, %v930
    %s933 = sld [smem:[#allocation4 + $0x4f]]
    %v934 = vstv %s933
    %v935 = vmul.f32 %v883, %v934
    %937 = vrot.lane.b32.xlu0 %v935, 64
    %v938 = vpop.permute.xlu0 %937
    %v939 = vrot.slane %v938, 6
    %v940 = vsel %vm466, %v939, %v938
    %v942 = vadd.f32 %v870, %v940
    %s943 = sld [smem:[#allocation4 + $0x50]]
    %v944 = vstv %s943
    %v945 = vmul.f32 %v883, %v944
    %947 = vrot.lane.b32.xlu0 %v945, 64
    %v948 = vpop.permute.xlu0 %947
    %v949 = vrot.slane %v948, 6
    %v950 = vsel %vm466, %v949, %v948
    %v952 = vadd.f32 %v881, %v950
    %s953 = sld [smem:[#allocation4 + $0x51]]
    %v954 = vstv %s953
    %v955 = vmul.f32 %v883, %v954
    %957 = vrot.lane.b32.xlu0 %v955, 64
    %v958 = vpop.permute.xlu0 %957
    %v959 = vrot.slane %v958, 6
    %v960 = vsel %vm466, %v959, %v958
    %v962 = vadd.f32 %v892, %v960
    %s963 = sld [smem:[#allocation4 + $0x52]]
    %v964 = vstv %s963
    %v965 = vmul.f32 %v883, %v964
    %967 = vrot.lane.b32.xlu0 %v965, 64
    %v968 = vpop.permute.xlu0 %967
    %v969 = vrot.slane %v968, 6
    %v970 = vsel %vm466, %v969, %v968
    %v972 = vadd.f32 %v902, %v970
    %s973 = sld [smem:[#allocation4 + $0x53]]
    %v974 = vstv %s973
    %v975 = vmul.f32 %v883, %v974
    %977 = vrot.lane.b32.xlu0 %v975, 64
    %v978 = vpop.permute.xlu0 %977
    %v979 = vrot.slane %v978, 6
    %v980 = vsel %vm466, %v979, %v978
    %v982 = vadd.f32 %v912, %v980
    %s983 = sld [smem:[#allocation4 + $0x54]]
    %v984 = vstv %s983
    %v985 = vmul.f32 %v883, %v984
    %987 = vrot.lane.b32.xlu0 %v985, 48
    %v988 = vpop.permute.xlu0 %987
    %v989 = vrot.slane %v988, 6
    %v990 = vsel %vm537, %v989, %v988
    %v992 = vadd.f32 %v922, %v990
    %s993 = sld [smem:[#allocation4 + $0x55]]
    %v994 = vstv %s993
    %v995 = vmul.f32 %v883, %v994
    %997 = vrot.lane.b32.xlu0 %v995, 48
    %v998 = vpop.permute.xlu0 %997
    %v999 = vrot.slane %v998, 6
    %v1000 = vsel %vm537, %v999, %v998
    %v1002 = vadd.f32 %v932, %v1000
    %s1003 = sld [smem:[#allocation4 + $0x56]]
    %v1004 = vstv %s1003
    %v1005 = vmul.f32 %v883, %v1004
    %1007 = vrot.lane.b32.xlu0 %v1005, 48
    %v1008 = vpop.permute.xlu0 %1007
    %v1009 = vrot.slane %v1008, 6
    %v1010 = vsel %vm537, %v1009, %v1008
    %v1012 = vadd.f32 %v942, %v1010
    %s1013 = sld [smem:[#allocation4 + $0x57]]
    %v1014 = vstv %s1013
    %v1015 = vmul.f32 %v883, %v1014
    %1017 = vrot.lane.b32.xlu0 %v1015, 48
    %v1018 = vpop.permute.xlu0 %1017
    %v1019 = vrot.slane %v1018, 6
    %v1020 = vsel %vm537, %v1019, %v1018
    %v1022 = vadd.f32 %v952, %v1020
    %s1023 = sld [smem:[#allocation4 + $0x58]]
    %v1024 = vstv %s1023
    %v1025 = vmul.f32 %v883, %v1024
    %1027 = vrot.lane.b32.xlu0 %v1025, 48
    %v1028 = vpop.permute.xlu0 %1027
    %v1029 = vrot.slane %v1028, 6
    %v1030 = vsel %vm537, %v1029, %v1028
    %v1032 = vadd.f32 %v962, %v1030
    %s1033 = sld [smem:[#allocation4 + $0x59]]
    %v1034 = vstv %s1033
    %v1035 = vmul.f32 %v883, %v1034
    %1037 = vrot.lane.b32.xlu0 %v1035, 48
    %v1038 = vpop.permute.xlu0 %1037
    %v1039 = vrot.slane %v1038, 6
    %v1040 = vsel %vm537, %v1039, %v1038
    %v1042 = vadd.f32 %v972, %v1040
    %s1043 = sld [smem:[#allocation4 + $0x5a]]
    %v1044 = vstv %s1043
    %v1045 = vmul.f32 %v883, %v1044
    %1047 = vrot.lane.b32.xlu0 %v1045, 48
    %v1048 = vpop.permute.xlu0 %1047
    %v1049 = vrot.slane %v1048, 6
    %v1050 = vsel %vm537, %v1049, %v1048
    %v1052 = vadd.f32 %v982, %v1050
    %s1053 = sld [smem:[#allocation4 + $0x5b]]
    %v1054 = vstv %s1053
    %v1055 = vmul.f32 %v883, %v1054
    %1057 = vrot.lane.b32.xlu0 %v1055, 32
    %v1058 = vpop.permute.xlu0 %1057
    %v1059 = vrot.slane %v1058, 6
    %v1060 = vsel %vm608, %v1059, %v1058
    %v1062 = vadd.f32 %v992, %v1060
    %s1063 = sld [smem:[#allocation4 + $0x5c]]
    %v1064 = vstv %s1063
    %v1065 = vmul.f32 %v883, %v1064
    %1067 = vrot.lane.b32.xlu0 %v1065, 32
    %v1068 = vpop.permute.xlu0 %1067
    %v1069 = vrot.slane %v1068, 6
    %v1070 = vsel %vm608, %v1069, %v1068
    %v1072 = vadd.f32 %v1002, %v1070
    %s1073 = sld [smem:[#allocation4 + $0x5d]]
    %v1074 = vstv %s1073
    %v1075 = vmul.f32 %v883, %v1074
    %1077 = vrot.lane.b32.xlu0 %v1075, 32
    %v1078 = vpop.permute.xlu0 %1077
    %v1079 = vrot.slane %v1078, 6
    %v1080 = vsel %vm608, %v1079, %v1078
    %v1082 = vadd.f32 %v1012, %v1080
    %s1083 = sld [smem:[#allocation4 + $0x5e]]
    %v1084 = vstv %s1083
    %v1085 = vmul.f32 %v883, %v1084
    %1087 = vrot.lane.b32.xlu0 %v1085, 32
    %v1088 = vpop.permute.xlu0 %1087
    %v1089 = vrot.slane %v1088, 6
    %v1090 = vsel %vm608, %v1089, %v1088
    %v1092 = vadd.f32 %v1022, %v1090
    %s1093 = sld [smem:[#allocation4 + $0x5f]]
    %v1094 = vstv %s1093
    %v1095 = vmul.f32 %v883, %v1094
    %1097 = vrot.lane.b32.xlu0 %v1095, 32
    %v1098 = vpop.permute.xlu0 %1097
    %v1099 = vrot.slane %v1098, 6
    %v1100 = vsel %vm608, %v1099, %v1098
    %v1102 = vadd.f32 %v1032, %v1100
    %s1103 = sld [smem:[#allocation4 + $0x60]]
    %v1104 = vstv %s1103
    %v1105 = vmul.f32 %v883, %v1104
    %1107 = vrot.lane.b32.xlu0 %v1105, 32
    %v1108 = vpop.permute.xlu0 %1107
    %v1109 = vrot.slane %v1108, 6
    %v1110 = vsel %vm608, %v1109, %v1108
    %v1112 = vadd.f32 %v1042, %v1110
    %s1113 = sld [smem:[#allocation4 + $0x61]]
    %v1114 = vstv %s1113
    %v1115 = vmul.f32 %v883, %v1114
    %1117 = vrot.lane.b32.xlu0 %v1115, 32
    %v1118 = vpop.permute.xlu0 %1117
    %v1119 = vrot.slane %v1118, 6
    %v1120 = vsel %vm608, %v1119, %v1118
    %v1122 = vadd.f32 %v1052, %v1120
    %v1123 = vlaneseq
    %v1124 = vand.u32 %v1123, 127
    %v1125 = vadd.s32 %v1124, 128
    %vm1126 = vcmp.lt.s32.totalorder %v1124, 0
    %v1127 = vsub.s32 0, %v1124
    %v1128 = vsel %vm1126, %v1127, %v1124
    %v1129 = vshrl.u32 %v1128, 4
    %v1130 = vand.u32 %v1128, 15
    %v1131 = vsub.s32 0, %v1130
    %v1132 = vsel %vm1126, %v1131, %v1130
    %vm1133 = vcmp.lt.s32.totalorder %v1125, 0
    %v1134 = vsub.s32 0, %v1125
    %v1135 = vsel %vm1133, %v1134, %v1125
    %v1136 = vshrl.u32 %v1135, 4
    %v1137 = vand.u32 %v1135, 15
    %v1138 = vsub.s32 0, %v1137
    %v1139 = vsel %vm1133, %v1138, %v1137
    %vm1140 = vcmp.ne.s32.totalorder %v1132, 0
    %vm1141 = vcmp.ne.s32.totalorder %v1139, 0
    %vm1142 = vcmp.lt.s32.totalorder %v1132, 0
    %vm1143 = vcmp.lt.s32.totalorder %v1139, 0
    %vm1144 = vmand %vm1142, %vm1140
    %vm1145 = vmand %vm1143, %vm1141
    %v1146 = vadd.s32 %v1132, 16
    %v1147 = vadd.s32 %v1139, 16
    %v1148 = vsel %vm1144, %v1146, %v1132
    %v1149 = vsel %vm1145, %v1147, %v1139
    %s1150 = sld [smem:[#allocation3]]
    %v1151 = vstv %s1150
    %v1152 = vadd.s32 %v1148, 4294967293
    %v1153 = vadd.s32 %v1149, 4294967293
    %vm1154 = vcmp.ge.s32.totalorder %v1152, 0
    %vm1155 = vcmp.ge.s32.totalorder %v1153, 0
    %vm1156 = vcmp.lt.s32.totalorder %v1152, 16
    %vm1157 = vcmp.lt.s32.totalorder %v1153, 16
    %vm1158 = vmand %vm1154, %vm1156
    %vm1159 = vmand %vm1155, %vm1157
    %v1161 = vcombine.high %v1062, %v1062
    %v1163 = vunpack.c.l.s4 1983009808
    %v1164 = vunpack.c.0.s8 %v1163
    %v1165 = vlaneseq
    %v1166 = vshrl.u32 %v1165, 7
    %v1167 = vsub.s32 %v1164, %v1166
    %v1168 = vrot.slane %v1062, %v1167
    %v1170 = vunpack.c.l.s4 1983009808
    %v1171 = vunpack.c.0.s8 %v1170
    %v1172 = vlaneseq
    %v1173 = vshrl.u32 %v1172, 7
    %v1174 = vsub.s32 %v1171, %v1173
    %v1175 = vrot.slane %v1161, %v1174
    %v1176 = vcombine.high %v1168, %v1168
    %1177 = vrot.lane.b32.xlu0 %v1168, 51
    %v1178 = vpop.permute.xlu0 %1177
    %1179 = vrot.lane.b32.xlu0 %v1176, 51
    %v1180 = vpop.permute.xlu0 %1179
    %1181 = vrot.lane.b32.xlu0 %v1175, 51
    %v1182 = vpop.permute.xlu0 %1181
    %vm1183 = vcmask 416768
    %v1184 = vsel %vm1183, %v1178, %v1180
    %v1185 = vsel %vm1183, %v1180, %v1182
    %v1188 = vsel %vm1158, %v1184, 0.0
    %v1189 = vsel %vm1159, %v1185, 0.0
    %v1190 = vadd.f32 %v1151, %v1188
    %v1191 = vadd.f32 %v1151, %v1189
    %v1192 = vadd.s32 %v1148, 4294967294
    %v1193 = vadd.s32 %v1149, 4294967294
    %vm1194 = vcmp.ge.s32.totalorder %v1192, 0
    %vm1195 = vcmp.ge.s32.totalorder %v1193, 0
    %vm1196 = vcmp.lt.s32.totalorder %v1192, 16
    %vm1197 = vcmp.lt.s32.totalorder %v1193, 16
    %vm1198 = vmand %vm1194, %vm1196
    %vm1199 = vmand %vm1195, %vm1197
    %v1201 = vcombine.high %v1072, %v1072
    %v1203 = vunpack.c.l.s4 1983009808
    %v1204 = vunpack.c.0.s8 %v1203
    %v1205 = vlaneseq
    %v1206 = vshrl.u32 %v1205, 7
    %v1207 = vsub.s32 %v1204, %v1206
    %v1208 = vrot.slane %v1072, %v1207
    %v1210 = vunpack.c.l.s4 1983009808
    %v1211 = vunpack.c.0.s8 %v1210
    %v1212 = vlaneseq
    %v1213 = vshrl.u32 %v1212, 7
    %v1214 = vsub.s32 %v1211, %v1213
    %v1215 = vrot.slane %v1201, %v1214
    %v1216 = vcombine.high %v1208, %v1208
    %1217 = vrot.lane.b32.xlu0 %v1208, 50
    %v1218 = vpop.permute.xlu0 %1217
    %1219 = vrot.lane.b32.xlu0 %v1216, 50
    %v1220 = vpop.permute.xlu0 %1219
    %1221 = vrot.lane.b32.xlu0 %v1215, 50
    %v1222 = vpop.permute.xlu0 %1221
    %vm1223 = vcmask 408576
    %v1224 = vsel %vm1223, %v1218, %v1220
    %v1225 = vsel %vm1223, %v1220, %v1222
    %v1228 = vsel %vm1198, %v1224, 0.0
    %v1229 = vsel %vm1199, %v1225, 0.0
    %v1230 = vadd.f32 %v1190, %v1228
    %v1231 = vadd.f32 %v1191, %v1229
    %v1232 = vadd.s32 %v1148, 4294967295
    %v1233 = vadd.s32 %v1149, 4294967295
    %vm1234 = vcmp.ge.s32.totalorder %v1232, 0
    %vm1235 = vcmp.ge.s32.totalorder %v1233, 0
    %vm1236 = vcmp.lt.s32.totalorder %v1232, 16
    %vm1237 = vcmp.lt.s32.totalorder %v1233, 16
    %vm1238 = vmand %vm1234, %vm1236
    %vm1239 = vmand %vm1235, %vm1237
    %v1241 = vcombine.high %v1082, %v1082
    %v1243 = vunpack.c.l.s4 1983009808
    %v1244 = vunpack.c.0.s8 %v1243
    %v1245 = vlaneseq
    %v1246 = vshrl.u32 %v1245, 7
    %v1247 = vsub.s32 %v1244, %v1246
    %v1248 = vrot.slane %v1082, %v1247
    %v1250 = vunpack.c.l.s4 1983009808
    %v1251 = vunpack.c.0.s8 %v1250
    %v1252 = vlaneseq
    %v1253 = vshrl.u32 %v1252, 7
    %v1254 = vsub.s32 %v1251, %v1253
    %v1255 = vrot.slane %v1241, %v1254
    %v1256 = vcombine.high %v1248, %v1248
    %1257 = vrot.lane.b32.xlu0 %v1248, 49
    %v1258 = vpop.permute.xlu0 %1257
    %1259 = vrot.lane.b32.xlu0 %v1256, 49
    %v1260 = vpop.permute.xlu0 %1259
    %1261 = vrot.lane.b32.xlu0 %v1255, 49
    %v1262 = vpop.permute.xlu0 %1261
    %vm1263 = vcmask 400384
    %v1264 = vsel %vm1263, %v1258, %v1260
    %v1265 = vsel %vm1263, %v1260, %v1262
    %v1268 = vsel %vm1238, %v1264, 0.0
    %v1269 = vsel %vm1239, %v1265, 0.0
    %v1270 = vadd.f32 %v1230, %v1268
    %v1271 = vadd.f32 %v1231, %v1269
    %vm1272 = vcmp.ge.s32.totalorder %v1148, 0
    %vm1273 = vcmp.ge.s32.totalorder %v1149, 0
    %vm1274 = vcmp.lt.s32.totalorder %v1148, 16
    %vm1275 = vcmp.lt.s32.totalorder %v1149, 16
    %vm1276 = vmand %vm1272, %vm1274
    %vm1277 = vmand %vm1273, %vm1275
    %v1279 = vcombine.high %v1092, %v1092
    %v1281 = vunpack.c.l.s4 1983009808
    %v1282 = vunpack.c.0.s8 %v1281
    %v1283 = vlaneseq
    %v1284 = vshrl.u32 %v1283, 7
    %v1285 = vsub.s32 %v1282, %v1284
    %v1286 = vrot.slane %v1092, %v1285
    %v1288 = vunpack.c.l.s4 1983009808
    %v1289 = vunpack.c.0.s8 %v1288
    %v1290 = vlaneseq
    %v1291 = vshrl.u32 %v1290, 7
    %v1292 = vsub.s32 %v1289, %v1291
    %v1293 = vrot.slane %v1279, %v1292
    %v1294 = vcombine.high %v1286, %v1286
    %1295 = vrot.lane.b32.xlu0 %v1286, 48
    %v1296 = vpop.permute.xlu0 %1295
    %1297 = vrot.lane.b32.xlu0 %v1294, 48
    %v1298 = vpop.permute.xlu0 %1297
    %1299 = vrot.lane.b32.xlu0 %v1293, 48
    %v1300 = vpop.permute.xlu0 %1299
    %v1301 = vsel %vm537, %v1296, %v1298
    %v1302 = vsel %vm537, %v1298, %v1300
    %v1305 = vsel %vm1276, %v1301, 0.0
    %v1306 = vsel %vm1277, %v1302, 0.0
    %v1307 = vadd.f32 %v1270, %v1305
    %v1308 = vadd.f32 %v1271, %v1306
    %v1309 = vadd.s32 %v1148, 1
    %v1310 = vadd.s32 %v1149, 1
    %vm1311 = vcmp.ge.s32.totalorder %v1309, 0
    %vm1312 = vcmp.ge.s32.totalorder %v1310, 0
    %vm1313 = vcmp.lt.s32.totalorder %v1309, 16
    %vm1314 = vcmp.lt.s32.totalorder %v1310, 16
    %vm1315 = vmand %vm1311, %vm1313
    %vm1316 = vmand %vm1312, %vm1314
    %v1318 = vcombine.high %v1102, %v1102
    %v1320 = vunpack.c.l.s4 1983009808
    %v1321 = vunpack.c.0.s8 %v1320
    %v1322 = vlaneseq
    %v1323 = vshrl.u32 %v1322, 7
    %v1324 = vsub.s32 %v1321, %v1323
    %v1325 = vrot.slane %v1102, %v1324
    %v1327 = vunpack.c.l.s4 1983009808
    %v1328 = vunpack.c.0.s8 %v1327
    %v1329 = vlaneseq
    %v1330 = vshrl.u32 %v1329, 7
    %v1331 = vsub.s32 %v1328, %v1330
    %v1332 = vrot.slane %v1318, %v1331
    %v1333 = vcombine.high %v1325, %v1325
    %1334 = vrot.lane.b32.xlu0 %v1325, 47
    %v1335 = vpop.permute.xlu0 %1334
    %1336 = vrot.lane.b32.xlu0 %v1333, 47
    %v1337 = vpop.permute.xlu0 %1336
    %1338 = vrot.lane.b32.xlu0 %v1332, 47
    %v1339 = vpop.permute.xlu0 %1338
    %vm1340 = vcmask 384000
    %v1341 = vsel %vm1340, %v1335, %v1337
    %v1342 = vsel %vm1340, %v1337, %v1339
    %v1345 = vsel %vm1315, %v1341, 0.0
    %v1346 = vsel %vm1316, %v1342, 0.0
    %v1347 = vadd.f32 %v1307, %v1345
    %v1348 = vadd.f32 %v1308, %v1346
    %v1349 = vadd.s32 %v1148, 2
    %v1350 = vadd.s32 %v1149, 2
    %vm1351 = vcmp.ge.s32.totalorder %v1349, 0
    %vm1352 = vcmp.ge.s32.totalorder %v1350, 0
    %vm1353 = vcmp.lt.s32.totalorder %v1349, 16
    %vm1354 = vcmp.lt.s32.totalorder %v1350, 16
    %vm1355 = vmand %vm1351, %vm1353
    %vm1356 = vmand %vm1352, %vm1354
    %v1358 = vcombine.high %v1112, %v1112
    %v1360 = vunpack.c.l.s4 1983009808
    %v1361 = vunpack.c.0.s8 %v1360
    %v1362 = vlaneseq
    %v1363 = vshrl.u32 %v1362, 7
    %v1364 = vsub.s32 %v1361, %v1363
    %v1365 = vrot.slane %v1112, %v1364
    %v1367 = vunpack.c.l.s4 1983009808
    %v1368 = vunpack.c.0.s8 %v1367
    %v1369 = vlaneseq
    %v1370 = vshrl.u32 %v1369, 7
    %v1371 = vsub.s32 %v1368, %v1370
    %v1372 = vrot.slane %v1358, %v1371
    %v1373 = vcombine.high %v1365, %v1365
    %1374 = vrot.lane.b32.xlu0 %v1365, 46
    %v1375 = vpop.permute.xlu0 %1374
    %1376 = vrot.lane.b32.xlu0 %v1373, 46
    %v1377 = vpop.permute.xlu0 %1376
    %1378 = vrot.lane.b32.xlu0 %v1372, 46
    %v1379 = vpop.permute.xlu0 %1378
    %vm1380 = vcmask 375808
    %v1381 = vsel %vm1380, %v1375, %v1377
    %v1382 = vsel %vm1380, %v1377, %v1379
    %v1385 = vsel %vm1355, %v1381, 0.0
    %v1386 = vsel %vm1356, %v1382, 0.0
    %v1387 = vadd.f32 %v1347, %v1385
    %v1388 = vadd.f32 %v1348, %v1386
    %v1389 = vadd.s32 %v1148, 3
    %v1390 = vadd.s32 %v1149, 3
    %vm1391 = vcmp.ge.s32.totalorder %v1389, 0
    %vm1392 = vcmp.ge.s32.totalorder %v1390, 0
    %vm1393 = vcmp.lt.s32.totalorder %v1389, 16
    %vm1394 = vcmp.lt.s32.totalorder %v1390, 16
    %vm1395 = vmand %vm1391, %vm1393
    %vm1396 = vmand %vm1392, %vm1394
    %v1398 = vcombine.high %v1122, %v1122
    %v1400 = vunpack.c.l.s4 1983009808
    %v1401 = vunpack.c.0.s8 %v1400
    %v1402 = vlaneseq
    %v1403 = vshrl.u32 %v1402, 7
    %v1404 = vsub.s32 %v1401, %v1403
    %v1405 = vrot.slane %v1122, %v1404
    %v1407 = vunpack.c.l.s4 1983009808
    %v1408 = vunpack.c.0.s8 %v1407
    %v1409 = vlaneseq
    %v1410 = vshrl.u32 %v1409, 7
    %v1411 = vsub.s32 %v1408, %v1410
    %v1412 = vrot.slane %v1398, %v1411
    %v1413 = vcombine.high %v1405, %v1405
    %1414 = vrot.lane.b32.xlu0 %v1405, 45
    %v1415 = vpop.permute.xlu0 %1414
    %1416 = vrot.lane.b32.xlu0 %v1413, 45
    %v1417 = vpop.permute.xlu0 %1416
    %1418 = vrot.lane.b32.xlu0 %v1412, 45
    %v1419 = vpop.permute.xlu0 %1418
    %vm1420 = vcmask 367616
    %v1421 = vsel %vm1420, %v1415, %v1417
    %v1422 = vsel %vm1420, %v1417, %v1419
    %v1425 = vsel %vm1395, %v1421, 0.0
    %v1426 = vsel %vm1396, %v1422, 0.0
    %v1427 = vadd.f32 %v1387, %v1425
    %v1428 = vadd.f32 %v1388, %v1426
    %v1429 = vxor.u32 %v1427, 2147483648
    %v1430 = vxor.u32 %v1428, 2147483648
    %v1431 = vmul.f32 %v1429, 1.442695
    %v1432 = vpow.pop %v1431
    %v1433 = vmul.f32 %v1430, 1.442695
    %v1434 = vpow.pop %v1433
    %v1435 = vadd.f32 %v1432, 1.0
    %v1436 = vadd.f32 %v1434, 1.0
    %v1437 = vrcp.pop %v1435
    %v1438 = vmul.f32 1.0, %v1437
    %v1439 = vrcp.pop %v1436
    %v1440 = vmul.f32 1.0, %v1439
    %v1441 = vlaneseq
    %v1442 = vshrl.u32 %v1441, 7
    %v1443 = vsub.s32 0, %v1442
    %v1444 = vrot.slane %v1438, %v1443
    %v1445 = vlaneseq
    %v1446 = vshrl.u32 %v1445, 7
    %v1447 = vsub.s32 0, %v1446
    %v1448 = vrot.slane %v1440, %v1447
    %v1449 = vld [vmem:[%s45] sm:$0xff]
    %v1452 = vcombine.low %v1444, %v1448
    %v1454 = vmul.f32 %v1449, %v1452
    %s1455 = smul.addr %s43, 4
    %s1456 = scalar_lea.vmem [#allocation9], %s1455
    %1457 = vst [vmem:[%s1456] sm:$0xff] %v1454
    %v1458 = vlaneseq
    %v1459 = vshrl.u32 %v1458, 7
    %v1460 = vsub.s32 1, %v1459
    %v1461 = vrot.slane %v1438, %v1460
    %v1462 = vlaneseq
    %v1463 = vshrl.u32 %v1462, 7
    %v1464 = vsub.s32 1, %v1463
    %v1465 = vrot.slane %v1440, %v1464
    %v1466 = vld [vmem:[%s132] sm:$0xff]
    %v1469 = vcombine.low %v1461, %v1465
    %v1471 = vmul.f32 %v1466, %v1469
    %s1472 = scalar_lea.vmem [#allocation9], 8
    %s1473 = smul.addr %s43, 4
    %s1474 = scalar_lea.vmem %s1472, %s1473 [#allocation9]
    %1475 = vst [vmem:[%s1474] sm:$0xff] %v1471
    // Predicated region
    $region22: #{tpu_custom_call.1} parent=1 // pred_check
      _
    $region23: #{tpu_custom_call.1} parent=1 // pred_check_branch
      %1477 = sbr.rel (0) target = $region25
    $region24: #{tpu_custom_call.1} parent=1 // pred_region
      %s1479 = ssub.s32 256, 256
      %1480 = vsyncadd [#allocation6], %s1479
      %s1481 = sshll.u32 [#allocation9], 4
      %s1482 = int_to_ptr.vmem [resolvable:$true] %s1481
      %1487 = dma.vmem_to_hbm [thread:$0]  %s1482, 256, %s3, [#allocation6], 128, 128, 8
    $region25: #{tpu_custom_call.1} parent=1 // pred_fallthru
      _
    // Predicated region
    $region26: #{tpu_custom_call.1} parent=1 // pred_check
      _
    $region27: #{tpu_custom_call.1} parent=1 // pred_check_branch
      %1489 = sbr.rel (0) target = $region29
    $region28: #{tpu_custom_call.1} parent=1 // pred_region
      %1490 = dma.done [#allocation6], 256
    $region29: #{tpu_custom_call.1} parent=1 // pred_fallthru
      _
    %1491 = vsyncpa [#allocation5], 1
    %1492 = vsyncpa [#allocation6], 1
    %1493 = vsyncpa [#allocation7], 1

</llo_original>
